<compile_context>
chip_gen: v6e
topology: v6e:2x2x1
jax: 0.10.0
libtpu: 0.0.40
codegen_flags: <defaults>
</compile_context>

<pallas_src>
import functools

import jax
import jax.numpy as jnp
from jax import lax
from jax.experimental import pallas as pl
from jax.experimental.pallas import tpu as pltpu

EPS = 1e-6          # PAM_Module eps (added to sum(K), as in the reference)
NORM_EPS = 1e-12    # NaN guard inside the l2-norm rsqrt (not in the reference)
MXU_DTYPE = jnp.bfloat16   # MXU operand dtype; all accumulation stays float32


def _round_up(a, b):
    return (a + b - 1) // b * b


# ----------------------------------------------------------------------------
# Fused PAM_CAM_Layer kernel (one batch element per grid step)
# ----------------------------------------------------------------------------
def _pam_cam_fused_kernel(gam_ref, x_ref, w1_ref, b1_ref, wqkv_ref, bqkv_ref,
                          w2p_ref, b2p_ref, w2c_ref, b2c_ref, w3_ref, b3_ref,
                          o_ref, xpad_ref, *, H, W, dp):
    C, N = x_ref.shape            # lane-dense interior layout, N = H*W
    Wp = W + 2
    Np = (H + 2) * Wp             # number of zero-padded spatial positions
    G = Wp + 1                    # halo so every tap's Np-window stays in bounds

    # ---- build the flattened zero-padded image in VMEM (no host-side pads) ----
    xpad_ref[...] = jnp.zeros_like(xpad_ref)
    for h in range(H):            # H small row copies of (C, W)
        dst = G + (h + 1) * Wp + 1
        xpad_ref[:, dst:dst + W] = x_ref[:, h * W:(h + 1) * W]

    # ---- conv1 (3x3 / pad 1 / ReLU) as ONE stacked matmul with K = 9*C ----
    # For interior flat position n = (h+1)*Wp + (w+1), the tap-(kh,kw) window
    # starting at G + (kh-1)*Wp + (kw-1) holds exactly x_padded[h+kh, w+kw].
    starts = [G + (kh - 1) * Wp + (kw - 1) for kh in range(3) for kw in range(3)]
    stacked = jnp.concatenate([xpad_ref[:, s:s + Np] for s in starts],
                              axis=0).astype(MXU_DTYPE)                 # (9C, Np)
    conv = jnp.dot(w1_ref[...], stacked,
                   preferred_element_type=jnp.float32)                  # (C, Np)
    # compact to the lane-dense interior layout (drop the 1-pixel pad border)
    xf = jnp.concatenate(
        [conv[:, (h + 1) * Wp + 1:(h + 1) * Wp + 1 + W] for h in range(H)],
        axis=1)                                                          # (C, N)
    xf = jnp.maximum(xf + b1_ref[...], 0.0)
    xf16 = xf.astype(MXU_DTYPE)

    # ---- PAM branch: stacked q/k/v projection + linear attention ----
    qkv = (jnp.dot(wqkv_ref[...], xf16, preferred_element_type=jnp.float32)
           + bqkv_ref[...])                                              # (2dp+C, N)
    q = qkv[:dp]                  # rows >= d are exactly zero (zero-padded weights)
    k = qkv[dp:2 * dp]
    v = qkv[2 * dp:]
    qn = q * lax.rsqrt(jnp.sum(q * q, axis=0, keepdims=True) + NORM_EPS)
    kn = k * lax.rsqrt(jnp.sum(k * k, axis=0, keepdims=True) + NORM_EPS)
    k_sum = jnp.sum(kn, axis=1, keepdims=True) + EPS                    # (dp, 1)
    # tailor[n] = 1 / (H*W + sum_c qn[c, n] * k_sum[c])   (approx recip: EUP slot)
    tailor = pl.reciprocal(
        float(H * W) + jnp.sum(qn * k_sum, axis=0, keepdims=True),
        approx=True)                                                     # (1, N)
    value_sum = jnp.sum(v, axis=1, keepdims=True)                       # (C, 1)
    kn16 = kn.astype(MXU_DTYPE)
    qn16 = qn.astype(MXU_DTYPE)
    v16 = v.astype(MXU_DTYPE)
    # matrix[m, c] = sum_n kn[m, n] * v[c, n]
    matrix = lax.dot_general(kn16, v16, (((1,), (1,)), ((), ())),
                             preferred_element_type=jnp.float32)        # (dp, C)
    # ms[c, n] = value_sum[c] + sum_m qn[m, n] * matrix[m, c]
    ms = value_sum + lax.dot_general(matrix.astype(MXU_DTYPE), qn16,
                                     (((0,), (0,)), ((), ())),
                                     preferred_element_type=jnp.float32)  # (C, N)
    pam = xf + gam_ref[0] * (ms * tailor)

    # ---- CAM branch: CxC gram (f32 — softmax-sensitive), exact softmax ----
    energy = lax.dot_general(xf, xf, (((1,), (1,)), ((), ())),
                             preferred_element_type=jnp.float32)        # (C, C)
    energy_new = jnp.max(energy, axis=-1, keepdims=True) - energy
    e = jnp.exp(energy_new - jnp.max(energy_new, axis=-1, keepdims=True))
    attn = e / jnp.sum(e, axis=-1, keepdims=True)     # exact divide on (C,1): cheap
    cam = gam_ref[1] * jnp.dot(attn.astype(MXU_DTYPE), xf16,
                               preferred_element_type=jnp.float32) + xf

    # ---- conv2P / conv2C (1x1 + ReLU), sum, conv3 (1x1 + ReLU), all fused ----
    p2 = jnp.maximum(
        jnp.dot(w2p_ref[...], pam.astype(MXU_DTYPE),
                preferred_element_type=jnp.float32) + b2p_ref[...], 0.0)
    c2 = jnp.maximum(
        jnp.dot(w2c_ref[...], cam.astype(MXU_DTYPE),
                preferred_element_type=jnp.float32) + b2c_ref[...], 0.0)
    out = jnp.maximum(
        jnp.dot(w3_ref[...], (p2 + c2).astype(MXU_DTYPE),
                preferred_element_type=jnp.float32) + b3_ref[...], 0.0)
    o_ref[...] = out                                                     # (C, N)


# ----------------------------------------------------------------------------
# Wrapper: cheap layout prep + single pallas_call for the whole layer
# ----------------------------------------------------------------------------
@jax.jit
def pam_cam_layer(x_nchw, params):
    B, C, H, W = x_nchw.shape
    N = H * W
    Wp = W + 2
    Np = (H + 2) * Wp
    G = Wp + 1
    pad_len = _round_up(Np + 2 * G, 128)      # lane-padded flat-image scratch

    # Free reshape (contiguous); no host-side padding passes.
    x_flat = x_nchw.reshape(B, C, N).astype(jnp.float32)

    # conv1 weights stacked tap-major: (C_out, 9*C_in), col = (kh*3+kw)*C_in + c_in
    w1s = jnp.transpose(params["w1"], (0, 2, 3, 1)).reshape(C, 9 * C).astype(MXU_DTYPE)
    b1 = params["b1"].reshape(C, 1).astype(jnp.float32)

    # Stacked, sublane-padded q/k/v projection (padded zero rows are inert).
    d = params["wq"].shape[0]
    dp = _round_up(max(d, 1), 8)
    wq = jnp.zeros((dp, C), jnp.float32).at[:d].set(params["wq"])
    wk = jnp.zeros((dp, C), jnp.float32).at[:d].set(params["wk"])
    bq = jnp.zeros((dp,), jnp.float32).at[:d].set(params["bq"])
    bk = jnp.zeros((dp,), jnp.float32).at[:d].set(params["bk"])
    wqkv = jnp.concatenate([wq, wk, params["wv"].astype(jnp.float32)],
                           axis=0).astype(MXU_DTYPE)
    bqkv = jnp.concatenate([bq, bk, params["bv"].astype(jnp.float32)],
                           axis=0).reshape(-1, 1)
    Cq = 2 * dp + C

    gammas = jnp.concatenate([params["gamma_pam"],
                              params["gamma_cam"]]).astype(jnp.float32)

    w2p = params["w2p"].astype(MXU_DTYPE)
    w2c = params["w2c"].astype(MXU_DTYPE)
    w3 = params["w3"].astype(MXU_DTYPE)
    b2p = params["b2p"].reshape(C, 1).astype(jnp.float32)
    b2c = params["b2c"].reshape(C, 1).astype(jnp.float32)
    b3 = params["b3"].reshape(C, 1).astype(jnp.float32)

    def wspec(*shape):
        return pl.BlockSpec(shape, lambda i: (0,) * len(shape))

    kern = functools.partial(_pam_cam_fused_kernel, H=H, W=W, dp=dp)
    out = pl.pallas_call(
        kern,
        out_shape=jax.ShapeDtypeStruct((B, C, N), jnp.float32),
        grid=(B,),
        in_specs=[
            pl.BlockSpec(memory_space=pltpu.MemorySpace.SMEM),   # gammas (2,)
            pl.BlockSpec((None, C, N), lambda i: (i, 0, 0)),     # x, per image
            wspec(C, 9 * C),                                     # conv1 stacked
            wspec(C, 1),                                         # b1
            wspec(Cq, C),                                        # stacked wq/wk/wv
            wspec(Cq, 1),                                        # stacked biases
            wspec(C, C), wspec(C, 1),                            # w2p, b2p
            wspec(C, C), wspec(C, 1),                            # w2c, b2c
            wspec(C, C), wspec(C, 1),                            # w3, b3
        ],
        out_specs=pl.BlockSpec((None, C, N), lambda i: (i, 0, 0)),
        scratch_shapes=[pltpu.VMEM((C, pad_len), jnp.float32)],  # padded flat image
        compiler_params=pltpu.CompilerParams(
            dimension_semantics=("parallel",),
            # raise further (bounded by chip VMEM: 64 MiB on v7x) when scaling C/H/W
            vmem_limit_bytes=32 * 1024 * 1024),
    )(gammas, x_flat, w1s, b1, wqkv, bqkv, w2p, b2p, w2c, b2c, w3, b3)

    return out.reshape(B, C, H, W)   # contiguous reshape; no border slice needed


# ----------------------------------------------------------------------------
# Pure-JAX (XLA) reference of the PyTorch module, for a numerical self-check.
# `mxu_dtype` applies the same matmul-operand cast policy as the kernel so the
# check stays tight; mxu_dtype=float32 gives exact-f32 PyTorch-module parity.
# ----------------------------------------------------------------------------
def _reference_forward(x, p, mxu_dtype=jnp.float32):
    B, C, H, W = x.shape
    N = H * W
    hp = lax.Precision.HIGHEST
    f32 = jnp.float32

    def c(a):
        return a.astype(mxu_dtype)

    def conv1x1_relu(xf, w, b):
        y = jnp.einsum("oc,bcn->bon", c(w), c(xf), precision=hp,
                       preferred_element_type=f32)
        return jax.nn.relu(y + b.reshape(1, -1, 1))

    y = lax.conv_general_dilated(c(x), c(p["w1"]), (1, 1), ((1, 1), (1, 1)),
                                 dimension_numbers=("NCHW", "OIHW", "NCHW"),
                                 precision=hp, preferred_element_type=f32)
    xf = jax.nn.relu(y + p["b1"].reshape(1, -1, 1, 1)).reshape(B, C, N)

    # PAM
    def proj(w, b):
        return (jnp.einsum("oc,bcn->bon", c(w), c(xf), precision=hp,
                           preferred_element_type=f32) + b.reshape(1, -1, 1))
    q = proj(p["wq"], p["bq"])
    k = proj(p["wk"], p["bk"])
    v = proj(p["wv"], p["bv"])
    qn = q / jnp.linalg.norm(q, axis=1, keepdims=True)
    kn = k / jnp.linalg.norm(k, axis=1, keepdims=True)
    tailor = 1.0 / (N + jnp.einsum("bcn,bc->bn", qn,
                                   jnp.sum(kn, axis=-1) + EPS, precision=hp))
    value_sum = jnp.sum(v, axis=-1, keepdims=True)
    matrix = jnp.einsum("bmn,bcn->bmc", c(kn), c(v), precision=hp,
                        preferred_element_type=f32)
    ms = value_sum + jnp.einsum("bmn,bmc->bcn", c(qn), c(matrix), precision=hp,
                                preferred_element_type=f32)
    pam = xf + p["gamma_pam"][0] * (ms * tailor[:, None, :])

    # CAM (gram kept in f32, mirroring the kernel)
    energy = jnp.einsum("bcn,bdn->bcd", xf, xf, precision=hp)
    energy_new = jnp.max(energy, axis=-1, keepdims=True) - energy
    attn = jax.nn.softmax(energy_new, axis=-1)
    cam = p["gamma_cam"][0] * jnp.einsum("bcd,bdn->bcn", c(attn), c(xf),
                                         precision=hp,
                                         preferred_element_type=f32) + xf

    s = conv1x1_relu(pam, p["w2p"], p["b2p"]) + conv1x1_relu(cam, p["w2c"], p["b2c"])
    out = conv1x1_relu(s, p["w3"], p["b3"])
    return out.reshape(B, C, H, W)


def init_params(key, in_ch, scale=8):
    d = in_ch // scale
    ks = jax.random.split(key, 12)

    def conv_w(k, cout, cin, kh, kw):
        fan_in = cin * kh * kw
        return (jax.random.normal(k, (cout, cin, kh, kw), jnp.float32)
                * (1.0 / jnp.sqrt(fan_in)))

    def conv_b(k, cout):
        return jax.random.normal(k, (cout,), jnp.float32) * 0.05

    params = {
        "w1": conv_w(ks[0], in_ch, in_ch, 3, 3), "b1": conv_b(ks[1], in_ch),
        "wq": conv_w(ks[2], d, in_ch, 1, 1).reshape(d, in_ch),
        "bq": conv_b(ks[3], d),
        "wk": conv_w(ks[4], d, in_ch, 1, 1).reshape(d, in_ch),
        "bk": conv_b(ks[5], d),
        "wv": conv_w(ks[6], in_ch, in_ch, 1, 1).reshape(in_ch, in_ch),
        "bv": conv_b(ks[7], in_ch),
        "w2p": conv_w(ks[8], in_ch, in_ch, 1, 1).reshape(in_ch, in_ch),
        "b2p": conv_b(ks[9], in_ch),
        "w2c": conv_w(ks[10], in_ch, in_ch, 1, 1).reshape(in_ch, in_ch),
        "b2c": conv_b(ks[11], in_ch),
        "w3": conv_w(jax.random.fold_in(key, 100), in_ch, in_ch, 1, 1).reshape(in_ch, in_ch),
        "b3": conv_b(jax.random.fold_in(key, 101), in_ch),
        # PyTorch __init__ sets gamma = zeros(1); use a nonzero deterministic
        # value so the attention paths actually contribute to the output.
        "gamma_pam": jnp.array([0.5], jnp.float32),
        "gamma_cam": jnp.array([0.5], jnp.float32),
    }
    return params


if __name__ == "__main__":
    in_ch = 16          # must be >= scale(=8) so query/key convs have >= 1 channel
    B, H, W = 2, 16, 16

    key = jax.random.PRNGKey(0)
    kp, kx = jax.random.split(key)
    params = init_params(kp, in_ch)
    x = jax.random.normal(kx, (B, in_ch, H, W), jnp.float32)

    y = jax.block_until_ready(pam_cam_layer(x, params))
    assert y.shape == (B, in_ch, H, W)
    assert bool(jnp.all(jnp.isfinite(y)))

    # Numerical self-check against a pure-JAX reference using the same
    # bf16-operand / f32-accumulate matmul policy as the kernel (remaining
    # differences: approx tailor reciprocal, rsqrt eps, accumulation order).
    y_ref = _reference_forward(x, params, mxu_dtype=MXU_DTYPE)
    err = float(jnp.max(jnp.abs(y - y_ref)))
    assert err < 5e-2, f"mismatch vs reference: max abs err = {err}"

    print("KERNEL_OK")
</pallas_src>

<mosaic_0001>
module attributes {stable_mosaic.version = 11 : i64} {
  func.func @_pam_cam_fused_kernel(%arg0: i32, %arg1: memref<2xf32, #tpu.memory_space<smem>>, %arg2: memref<1x16x256xf32, #tpu.memory_space<vmem>>, %arg3: memref<16x144xbf16, #tpu.memory_space<vmem>>, %arg4: memref<16x1xf32, #tpu.memory_space<vmem>>, %arg5: memref<32x16xbf16, #tpu.memory_space<vmem>>, %arg6: memref<32x1xf32, #tpu.memory_space<vmem>>, %arg7: memref<16x16xbf16, #tpu.memory_space<vmem>>, %arg8: memref<16x1xf32, #tpu.memory_space<vmem>>, %arg9: memref<16x16xbf16, #tpu.memory_space<vmem>>, %arg10: memref<16x1xf32, #tpu.memory_space<vmem>>, %arg11: memref<16x16xbf16, #tpu.memory_space<vmem>>, %arg12: memref<16x1xf32, #tpu.memory_space<vmem>>, %arg13: memref<1x16x256xf32, #tpu.memory_space<vmem>>, %arg14: memref<16x384xf32, #tpu.memory_space<vmem>>) attributes {dimension_semantics = [#tpu.dimension_semantics<parallel>], iteration_bounds = array<i64: 2>, scalar_prefetch = 0 : i64, scratch_operands = 1 : i64, tpu.core_type = #tpu.core_type<tc>, window_params = [{transform_indices = @transform_0, window_bounds = array<i64: 2>}, {transform_indices = @transform_1, window_bounds = array<i64: 1, 16, 256>}, {pipeline_mode = #tpu.pipeline_mode<synchronous>, transform_indices = @transform_2, window_bounds = array<i64: 16, 144>}, {pipeline_mode = #tpu.pipeline_mode<synchronous>, transform_indices = @transform_3, window_bounds = array<i64: 16, 1>}, {pipeline_mode = #tpu.pipeline_mode<synchronous>, transform_indices = @transform_4, window_bounds = array<i64: 32, 16>}, {pipeline_mode = #tpu.pipeline_mode<synchronous>, transform_indices = @transform_5, window_bounds = array<i64: 32, 1>}, {pipeline_mode = #tpu.pipeline_mode<synchronous>, transform_indices = @transform_6, window_bounds = array<i64: 16, 16>}, {pipeline_mode = #tpu.pipeline_mode<synchronous>, transform_indices = @transform_7, window_bounds = array<i64: 16, 1>}, {pipeline_mode = #tpu.pipeline_mode<synchronous>, transform_indices = @transform_8, window_bounds = array<i64: 16, 16>}, {pipeline_mode = #tpu.pipeline_mode<synchronous>, transform_indices = @transform_9, window_bounds = array<i64: 16, 1>}, {pipeline_mode = #tpu.pipeline_mode<synchronous>, transform_indices = @transform_10, window_bounds = array<i64: 16, 16>}, {pipeline_mode = #tpu.pipeline_mode<synchronous>, transform_indices = @transform_11, window_bounds = array<i64: 16, 1>}, {transform_indices = @transform_12, window_bounds = array<i64: 1, 16, 256>}]} {
    %cst = arith.constant 0.000000e+00 : f32
    %0 = vector.broadcast %cst : f32 to vector<16x384xf32>
    %c0 = arith.constant 0 : index
    %c0_0 = arith.constant 0 : index
    %1 = vector.load %arg14[%c0, %c0_0] : memref<16x384xf32, #tpu.memory_space<vmem>>, vector<16x384xf32>
    tpu.vector_store %arg14[%c0, %c0_0], %0 {strides = array<i32>} : memref<16x384xf32, #tpu.memory_space<vmem>>, vector<16x384xf32>,
    %c0_1 = arith.constant 0 : index
    %c0_2 = arith.constant 0 : index
    %c0_3 = arith.constant 0 : index
    %2 = vector.load %arg2[%c0_1, %c0_2, %c0_3] : memref<1x16x256xf32, #tpu.memory_space<vmem>>, vector<1x16x16xf32>
    %3 = vector.shape_cast %2 : vector<1x16x16xf32> to vector<16x16xf32>
    %c0_4 = arith.constant 0 : index
    %c38 = arith.constant 38 : index
    %4 = vector.load %arg14[%c0_4, %c38] : memref<16x384xf32, #tpu.memory_space<vmem>>, vector<16x16xf32>
    tpu.vector_store %arg14[%c0_4, %c38], %3 {strides = array<i32>} : memref<16x384xf32, #tpu.memory_space<vmem>>, vector<16x16xf32>,
    %c0_5 = arith.constant 0 : index
    %c0_6 = arith.constant 0 : index
    %c16 = arith.constant 16 : index
    %5 = vector.load %arg2[%c0_5, %c0_6, %c16] : memref<1x16x256xf32, #tpu.memory_space<vmem>>, vector<1x16x16xf32>
    %6 = vector.shape_cast %5 : vector<1x16x16xf32> to vector<16x16xf32>
    %c0_7 = arith.constant 0 : index
    %c56 = arith.constant 56 : index
    %7 = vector.load %arg14[%c0_7, %c56] : memref<16x384xf32, #tpu.memory_space<vmem>>, vector<16x16xf32>
    tpu.vector_store %arg14[%c0_7, %c56], %6 {strides = array<i32>} : memref<16x384xf32, #tpu.memory_space<vmem>>, vector<16x16xf32>,
    %c0_8 = arith.constant 0 : index
    %c0_9 = arith.constant 0 : index
    %c32 = arith.constant 32 : index
    %8 = vector.load %arg2[%c0_8, %c0_9, %c32] : memref<1x16x256xf32, #tpu.memory_space<vmem>>, vector<1x16x16xf32>
    %9 = vector.shape_cast %8 : vector<1x16x16xf32> to vector<16x16xf32>
    %c0_10 = arith.constant 0 : index
    %c74 = arith.constant 74 : index
    %10 = vector.load %arg14[%c0_10, %c74] : memref<16x384xf32, #tpu.memory_space<vmem>>, vector<16x16xf32>
    tpu.vector_store %arg14[%c0_10, %c74], %9 {strides = array<i32>} : memref<16x384xf32, #tpu.memory_space<vmem>>, vector<16x16xf32>,
    %c0_11 = arith.constant 0 : index
    %c0_12 = arith.constant 0 : index
    %c48 = arith.constant 48 : index
    %11 = vector.load %arg2[%c0_11, %c0_12, %c48] : memref<1x16x256xf32, #tpu.memory_space<vmem>>, vector<1x16x16xf32>
    %12 = vector.shape_cast %11 : vector<1x16x16xf32> to vector<16x16xf32>
    %c0_13 = arith.constant 0 : index
    %c92 = arith.constant 92 : index
    %13 = vector.load %arg14[%c0_13, %c92] : memref<16x384xf32, #tpu.memory_space<vmem>>, vector<16x16xf32>
    tpu.vector_store %arg14[%c0_13, %c92], %12 {strides = array<i32>} : memref<16x384xf32, #tpu.memory_space<vmem>>, vector<16x16xf32>,
    %c0_14 = arith.constant 0 : index
    %c0_15 = arith.constant 0 : index
    %c64 = arith.constant 64 : index
    %14 = vector.load %arg2[%c0_14, %c0_15, %c64] : memref<1x16x256xf32, #tpu.memory_space<vmem>>, vector<1x16x16xf32>
    %15 = vector.shape_cast %14 : vector<1x16x16xf32> to vector<16x16xf32>
    %c0_16 = arith.constant 0 : index
    %c110 = arith.constant 110 : index
    %16 = vector.load %arg14[%c0_16, %c110] : memref<16x384xf32, #tpu.memory_space<vmem>>, vector<16x16xf32>
    tpu.vector_store %arg14[%c0_16, %c110], %15 {strides = array<i32>} : memref<16x384xf32, #tpu.memory_space<vmem>>, vector<16x16xf32>,
    %c0_17 = arith.constant 0 : index
    %c0_18 = arith.constant 0 : index
    %c80 = arith.constant 80 : index
    %17 = vector.load %arg2[%c0_17, %c0_18, %c80] : memref<1x16x256xf32, #tpu.memory_space<vmem>>, vector<1x16x16xf32>
    %18 = vector.shape_cast %17 : vector<1x16x16xf32> to vector<16x16xf32>
    %c0_19 = arith.constant 0 : index
    %c128 = arith.constant 128 : index
    %19 = vector.load %arg14[%c0_19, %c128] : memref<16x384xf32, #tpu.memory_space<vmem>>, vector<16x16xf32>
    tpu.vector_store %arg14[%c0_19, %c128], %18 {strides = array<i32>} : memref<16x384xf32, #tpu.memory_space<vmem>>, vector<16x16xf32>,
    %c0_20 = arith.constant 0 : index
    %c0_21 = arith.constant 0 : index
    %c96 = arith.constant 96 : index
    %20 = vector.load %arg2[%c0_20, %c0_21, %c96] : memref<1x16x256xf32, #tpu.memory_space<vmem>>, vector<1x16x16xf32>
    %21 = vector.shape_cast %20 : vector<1x16x16xf32> to vector<16x16xf32>
    %c0_22 = arith.constant 0 : index
    %c146 = arith.constant 146 : index
    %22 = vector.load %arg14[%c0_22, %c146] : memref<16x384xf32, #tpu.memory_space<vmem>>, vector<16x16xf32>
    tpu.vector_store %arg14[%c0_22, %c146], %21 {strides = array<i32>} : memref<16x384xf32, #tpu.memory_space<vmem>>, vector<16x16xf32>,
    %c0_23 = arith.constant 0 : index
    %c0_24 = arith.constant 0 : index
    %c112 = arith.constant 112 : index
    %23 = vector.load %arg2[%c0_23, %c0_24, %c112] : memref<1x16x256xf32, #tpu.memory_space<vmem>>, vector<1x16x16xf32>
    %24 = vector.shape_cast %23 : vector<1x16x16xf32> to vector<16x16xf32>
    %c0_25 = arith.constant 0 : index
    %c164 = arith.constant 164 : index
    %25 = vector.load %arg14[%c0_25, %c164] : memref<16x384xf32, #tpu.memory_space<vmem>>, vector<16x16xf32>
    tpu.vector_store %arg14[%c0_25, %c164], %24 {strides = array<i32>} : memref<16x384xf32, #tpu.memory_space<vmem>>, vector<16x16xf32>,
    %c0_26 = arith.constant 0 : index
    %c0_27 = arith.constant 0 : index
    %c128_28 = arith.constant 128 : index
    %26 = vector.load %arg2[%c0_26, %c0_27, %c128_28] : memref<1x16x256xf32, #tpu.memory_space<vmem>>, vector<1x16x16xf32>
    %27 = vector.shape_cast %26 : vector<1x16x16xf32> to vector<16x16xf32>
    %c0_29 = arith.constant 0 : index
    %c182 = arith.constant 182 : index
    %28 = vector.load %arg14[%c0_29, %c182] : memref<16x384xf32, #tpu.memory_space<vmem>>, vector<16x16xf32>
    tpu.vector_store %arg14[%c0_29, %c182], %27 {strides = array<i32>} : memref<16x384xf32, #tpu.memory_space<vmem>>, vector<16x16xf32>,
    %c0_30 = arith.constant 0 : index
    %c0_31 = arith.constant 0 : index
    %c144 = arith.constant 144 : index
    %29 = vector.load %arg2[%c0_30, %c0_31, %c144] : memref<1x16x256xf32, #tpu.memory_space<vmem>>, vector<1x16x16xf32>
    %30 = vector.shape_cast %29 : vector<1x16x16xf32> to vector<16x16xf32>
    %c0_32 = arith.constant 0 : index
    %c200 = arith.constant 200 : index
    %31 = vector.load %arg14[%c0_32, %c200] : memref<16x384xf32, #tpu.memory_space<vmem>>, vector<16x16xf32>
    tpu.vector_store %arg14[%c0_32, %c200], %30 {strides = array<i32>} : memref<16x384xf32, #tpu.memory_space<vmem>>, vector<16x16xf32>,
    %c0_33 = arith.constant 0 : index
    %c0_34 = arith.constant 0 : index
    %c160 = arith.constant 160 : index
    %32 = vector.load %arg2[%c0_33, %c0_34, %c160] : memref<1x16x256xf32, #tpu.memory_space<vmem>>, vector<1x16x16xf32>
    %33 = vector.shape_cast %32 : vector<1x16x16xf32> to vector<16x16xf32>
    %c0_35 = arith.constant 0 : index
    %c218 = arith.constant 218 : index
    %34 = vector.load %arg14[%c0_35, %c218] : memref<16x384xf32, #tpu.memory_space<vmem>>, vector<16x16xf32>
    tpu.vector_store %arg14[%c0_35, %c218], %33 {strides = array<i32>} : memref<16x384xf32, #tpu.memory_space<vmem>>, vector<16x16xf32>,
    %c0_36 = arith.constant 0 : index
    %c0_37 = arith.constant 0 : index
    %c176 = arith.constant 176 : index
    %35 = vector.load %arg2[%c0_36, %c0_37, %c176] : memref<1x16x256xf32, #tpu.memory_space<vmem>>, vector<1x16x16xf32>
    %36 = vector.shape_cast %35 : vector<1x16x16xf32> to vector<16x16xf32>
    %c0_38 = arith.constant 0 : index
    %c236 = arith.constant 236 : index
    %37 = vector.load %arg14[%c0_38, %c236] : memref<16x384xf32, #tpu.memory_space<vmem>>, vector<16x16xf32>
    tpu.vector_store %arg14[%c0_38, %c236], %36 {strides = array<i32>} : memref<16x384xf32, #tpu.memory_space<vmem>>, vector<16x16xf32>,
    %c0_39 = arith.constant 0 : index
    %c0_40 = arith.constant 0 : index
    %c192 = arith.constant 192 : index
    %38 = vector.load %arg2[%c0_39, %c0_40, %c192] : memref<1x16x256xf32, #tpu.memory_space<vmem>>, vector<1x16x16xf32>
    %39 = vector.shape_cast %38 : vector<1x16x16xf32> to vector<16x16xf32>
    %c0_41 = arith.constant 0 : index
    %c254 = arith.constant 254 : index
    %40 = vector.load %arg14[%c0_41, %c254] : memref<16x384xf32, #tpu.memory_space<vmem>>, vector<16x16xf32>
    tpu.vector_store %arg14[%c0_41, %c254], %39 {strides = array<i32>} : memref<16x384xf32, #tpu.memory_space<vmem>>, vector<16x16xf32>,
    %c0_42 = arith.constant 0 : index
    %c0_43 = arith.constant 0 : index
    %c208 = arith.constant 208 : index
    %41 = vector.load %arg2[%c0_42, %c0_43, %c208] : memref<1x16x256xf32, #tpu.memory_space<vmem>>, vector<1x16x16xf32>
    %42 = vector.shape_cast %41 : vector<1x16x16xf32> to vector<16x16xf32>
    %c0_44 = arith.constant 0 : index
    %c272 = arith.constant 272 : index
    %43 = vector.load %arg14[%c0_44, %c272] : memref<16x384xf32, #tpu.memory_space<vmem>>, vector<16x16xf32>
    tpu.vector_store %arg14[%c0_44, %c272], %42 {strides = array<i32>} : memref<16x384xf32, #tpu.memory_space<vmem>>, vector<16x16xf32>,
    %c0_45 = arith.constant 0 : index
    %c0_46 = arith.constant 0 : index
    %c224 = arith.constant 224 : index
    %44 = vector.load %arg2[%c0_45, %c0_46, %c224] : memref<1x16x256xf32, #tpu.memory_space<vmem>>, vector<1x16x16xf32>
    %45 = vector.shape_cast %44 : vector<1x16x16xf32> to vector<16x16xf32>
    %c0_47 = arith.constant 0 : index
    %c290 = arith.constant 290 : index
    %46 = vector.load %arg14[%c0_47, %c290] : memref<16x384xf32, #tpu.memory_space<vmem>>, vector<16x16xf32>
    tpu.vector_store %arg14[%c0_47, %c290], %45 {strides = array<i32>} : memref<16x384xf32, #tpu.memory_space<vmem>>, vector<16x16xf32>,
    %c0_48 = arith.constant 0 : index
    %c0_49 = arith.constant 0 : index
    %c240 = arith.constant 240 : index
    %47 = vector.load %arg2[%c0_48, %c0_49, %c240] : memref<1x16x256xf32, #tpu.memory_space<vmem>>, vector<1x16x16xf32>
    %48 = vector.shape_cast %47 : vector<1x16x16xf32> to vector<16x16xf32>
    %c0_50 = arith.constant 0 : index
    %c308 = arith.constant 308 : index
    %49 = vector.load %arg14[%c0_50, %c308] : memref<16x384xf32, #tpu.memory_space<vmem>>, vector<16x16xf32>
    tpu.vector_store %arg14[%c0_50, %c308], %48 {strides = array<i32>} : memref<16x384xf32, #tpu.memory_space<vmem>>, vector<16x16xf32>,
    %c0_51 = arith.constant 0 : index
    %c0_52 = arith.constant 0 : index
    %50 = vector.load %arg14[%c0_51, %c0_52] : memref<16x384xf32, #tpu.memory_space<vmem>>, vector<16x324xf32>
    %c0_53 = arith.constant 0 : index
    %c1 = arith.constant 1 : index
    %51 = vector.load %arg14[%c0_53, %c1] : memref<16x384xf32, #tpu.memory_space<vmem>>, vector<16x324xf32>
    %c0_54 = arith.constant 0 : index
    %c2 = arith.constant 2 : index
    %52 = vector.load %arg14[%c0_54, %c2] : memref<16x384xf32, #tpu.memory_space<vmem>>, vector<16x324xf32>
    %c0_55 = arith.constant 0 : index
    %c18 = arith.constant 18 : index
    %53 = vector.load %arg14[%c0_55, %c18] : memref<16x384xf32, #tpu.memory_space<vmem>>, vector<16x324xf32>
    %c0_56 = arith.constant 0 : index
    %c19 = arith.constant 19 : index
    %54 = vector.load %arg14[%c0_56, %c19] : memref<16x384xf32, #tpu.memory_space<vmem>>, vector<16x324xf32>
    %c0_57 = arith.constant 0 : index
    %c20 = arith.constant 20 : index
    %55 = vector.load %arg14[%c0_57, %c20] : memref<16x384xf32, #tpu.memory_space<vmem>>, vector<16x324xf32>
    %c0_58 = arith.constant 0 : index
    %c36 = arith.constant 36 : index
    %56 = vector.load %arg14[%c0_58, %c36] : memref<16x384xf32, #tpu.memory_space<vmem>>, vector<16x324xf32>
    %c0_59 = arith.constant 0 : index
    %c37 = arith.constant 37 : index
    %57 = vector.load %arg14[%c0_59, %c37] : memref<16x384xf32, #tpu.memory_space<vmem>>, vector<16x324xf32>
    %c0_60 = arith.constant 0 : index
    %c38_61 = arith.constant 38 : index
    %58 = vector.load %arg14[%c0_60, %c38_61] : memref<16x384xf32, #tpu.memory_space<vmem>>, vector<16x324xf32>
    %59 = tpu.concatenate %50, %51, %52, %53, %54, %55, %56, %57, %58 in 0 : vector<16x324xf32>, vector<16x324xf32>, vector<16x324xf32>, vector<16x324xf32>, vector<16x324xf32>, vector<16x324xf32>, vector<16x324xf32>, vector<16x324xf32>, vector<16x324xf32> -> vector<144x324xf32>
    %60 = arith.truncf %59 : vector<144x324xf32> to vector<144x324xbf16>
    %c0_62 = arith.constant 0 : index
    %c0_63 = arith.constant 0 : index
    %61 = vector.load %arg3[%c0_62, %c0_63] : memref<16x144xbf16, #tpu.memory_space<vmem>>, vector<16x144xbf16>
    %cst_64 = arith.constant dense<0.000000e+00> : vector<16x324xf32>
    %62 = tpu.matmul %61, %60, %cst_64 {dimension_numbers = #tpu.dot_dimension_numbers<[1], [0], [0], [1], [0, 0, 1, 1], [], []>} : vector<16x144xbf16>, vector<144x324xbf16>, vector<16x324xf32> -> vector<16x324xf32>
    %63 = vector.extract_strided_slice %62 {offsets = [0, 19], sizes = [16, 16], strides = [1, 1]} : vector<16x324xf32> to vector<16x16xf32>
    %64 = vector.extract_strided_slice %62 {offsets = [0, 37], sizes = [16, 16], strides = [1, 1]} : vector<16x324xf32> to vector<16x16xf32>
    %65 = vector.extract_strided_slice %62 {offsets = [0, 55], sizes = [16, 16], strides = [1, 1]} : vector<16x324xf32> to vector<16x16xf32>
    %66 = vector.extract_strided_slice %62 {offsets = [0, 73], sizes = [16, 16], strides = [1, 1]} : vector<16x324xf32> to vector<16x16xf32>
    %67 = vector.extract_strided_slice %62 {offsets = [0, 91], sizes = [16, 16], strides = [1, 1]} : vector<16x324xf32> to vector<16x16xf32>
    %68 = vector.extract_strided_slice %62 {offsets = [0, 109], sizes = [16, 16], strides = [1, 1]} : vector<16x324xf32> to vector<16x16xf32>
    %69 = vector.extract_strided_slice %62 {offsets = [0, 127], sizes = [16, 16], strides = [1, 1]} : vector<16x324xf32> to vector<16x16xf32>
    %70 = vector.extract_strided_slice %62 {offsets = [0, 145], sizes = [16, 16], strides = [1, 1]} : vector<16x324xf32> to vector<16x16xf32>
    %71 = vector.extract_strided_slice %62 {offsets = [0, 163], sizes = [16, 16], strides = [1, 1]} : vector<16x324xf32> to vector<16x16xf32>
    %72 = vector.extract_strided_slice %62 {offsets = [0, 181], sizes = [16, 16], strides = [1, 1]} : vector<16x324xf32> to vector<16x16xf32>
    %73 = vector.extract_strided_slice %62 {offsets = [0, 199], sizes = [16, 16], strides = [1, 1]} : vector<16x324xf32> to vector<16x16xf32>
    %74 = vector.extract_strided_slice %62 {offsets = [0, 217], sizes = [16, 16], strides = [1, 1]} : vector<16x324xf32> to vector<16x16xf32>
    %75 = vector.extract_strided_slice %62 {offsets = [0, 235], sizes = [16, 16], strides = [1, 1]} : vector<16x324xf32> to vector<16x16xf32>
    %76 = vector.extract_strided_slice %62 {offsets = [0, 253], sizes = [16, 16], strides = [1, 1]} : vector<16x324xf32> to vector<16x16xf32>
    %77 = vector.extract_strided_slice %62 {offsets = [0, 271], sizes = [16, 16], strides = [1, 1]} : vector<16x324xf32> to vector<16x16xf32>
    %78 = vector.extract_strided_slice %62 {offsets = [0, 289], sizes = [16, 16], strides = [1, 1]} : vector<16x324xf32> to vector<16x16xf32>
    %79 = tpu.concatenate %63, %64, %65, %66, %67, %68, %69, %70, %71, %72, %73, %74, %75, %76, %77, %78 in 1 : vector<16x16xf32>, vector<16x16xf32>, vector<16x16xf32>, vector<16x16xf32>, vector<16x16xf32>, vector<16x16xf32>, vector<16x16xf32>, vector<16x16xf32>, vector<16x16xf32>, vector<16x16xf32>, vector<16x16xf32>, vector<16x16xf32>, vector<16x16xf32>, vector<16x16xf32>, vector<16x16xf32>, vector<16x16xf32> -> vector<16x256xf32>
    %c0_65 = arith.constant 0 : index
    %c0_66 = arith.constant 0 : index
    %80 = vector.load %arg4[%c0_65, %c0_66] : memref<16x1xf32, #tpu.memory_space<vmem>>, vector<16x1xf32>
    %81 = vector.broadcast %80 : vector<16x1xf32> to vector<16x256xf32>
    %82 = arith.addf %79, %81 : vector<16x256xf32>
    %cst_67 = arith.constant 0.000000e+00 : f32
    %83 = vector.broadcast %cst_67 : f32 to vector<16x256xf32>
    %84 = arith.maximumf %82, %83 : vector<16x256xf32>
    %85 = arith.truncf %84 : vector<16x256xf32> to vector<16x256xbf16>
    %c0_68 = arith.constant 0 : index
    %c0_69 = arith.constant 0 : index
    %86 = vector.load %arg5[%c0_68, %c0_69] : memref<32x16xbf16, #tpu.memory_space<vmem>>, vector<32x16xbf16>
    %cst_70 = arith.constant dense<0.000000e+00> : vector<32x256xf32>
    %87 = tpu.matmul %86, %85, %cst_70 {dimension_numbers = #tpu.dot_dimension_numbers<[1], [0], [0], [1], [0, 0, 1, 1], [], []>} : vector<32x16xbf16>, vector<16x256xbf16>, vector<32x256xf32> -> vector<32x256xf32>
    %c0_71 = arith.constant 0 : index
    %c0_72 = arith.constant 0 : index
    %88 = vector.load %arg6[%c0_71, %c0_72] : memref<32x1xf32, #tpu.memory_space<vmem>>, vector<32x1xf32>
    %89 = vector.broadcast %88 : vector<32x1xf32> to vector<32x256xf32>
    %90 = arith.addf %87, %89 : vector<32x256xf32>
    %91 = vector.extract_strided_slice %90 {offsets = [0, 0], sizes = [8, 256], strides = [1, 1]} : vector<32x256xf32> to vector<8x256xf32>
    %92 = vector.extract_strided_slice %90 {offsets = [8, 0], sizes = [8, 256], strides = [1, 1]} : vector<32x256xf32> to vector<8x256xf32>
    %93 = vector.extract_strided_slice %90 {offsets = [16, 0], sizes = [16, 256], strides = [1, 1]} : vector<32x256xf32> to vector<16x256xf32>
    %94 = arith.mulf %91, %91 : vector<8x256xf32>
    %cst_73 = arith.constant dense<0.000000e+00> : vector<256xf32>
    %95 = vector.multi_reduction <add>, %94, %cst_73 [0] : vector<8x256xf32> to vector<256xf32>
    %96 = vector.shape_cast %95 : vector<256xf32> to vector<1x256xf32>
    %cst_74 = arith.constant 9.99999996E-13 : f32
    %97 = vector.broadcast %cst_74 : f32 to vector<1x256xf32>
    %98 = arith.addf %96, %97 : vector<1x256xf32>
    %99 = math.rsqrt %98 : vector<1x256xf32>
    %100 = vector.broadcast %99 : vector<1x256xf32> to vector<8x256xf32>
    %101 = arith.mulf %91, %100 : vector<8x256xf32>
    %102 = arith.mulf %92, %92 : vector<8x256xf32>
    %cst_75 = arith.constant dense<0.000000e+00> : vector<256xf32>
    %103 = vector.multi_reduction <add>, %102, %cst_75 [0] : vector<8x256xf32> to vector<256xf32>
    %104 = vector.shape_cast %103 : vector<256xf32> to vector<1x256xf32>
    %cst_76 = arith.constant 9.99999996E-13 : f32
    %105 = vector.broadcast %cst_76 : f32 to vector<1x256xf32>
    %106 = arith.addf %104, %105 : vector<1x256xf32>
    %107 = math.rsqrt %106 : vector<1x256xf32>
    %108 = vector.broadcast %107 : vector<1x256xf32> to vector<8x256xf32>
    %109 = arith.mulf %92, %108 : vector<8x256xf32>
    %cst_77 = arith.constant dense<0.000000e+00> : vector<8xf32>
    %110 = vector.multi_reduction <add>, %109, %cst_77 [1] : vector<8x256xf32> to vector<8xf32>
    %111 = vector.shape_cast %110 : vector<8xf32> to vector<8x1xf32>
    %cst_78 = arith.constant 9.99999997E-7 : f32
    %112 = vector.broadcast %cst_78 : f32 to vector<8x1xf32>
    %113 = arith.addf %111, %112 : vector<8x1xf32>
    %114 = vector.broadcast %113 : vector<8x1xf32> to vector<8x256xf32>
    %115 = arith.mulf %101, %114 : vector<8x256xf32>
    %cst_79 = arith.constant dense<0.000000e+00> : vector<256xf32>
    %116 = vector.multi_reduction <add>, %115, %cst_79 [0] : vector<8x256xf32> to vector<256xf32>
    %117 = vector.shape_cast %116 : vector<256xf32> to vector<1x256xf32>
    %cst_80 = arith.constant 2.560000e+02 : f32
    %118 = vector.broadcast %cst_80 : f32 to vector<1x256xf32>
    %119 = arith.addf %118, %117 : vector<1x256xf32>
    %120 = tpu.reciprocal %119 {approx = true} : vector<1x256xf32> -> vector<1x256xf32>
    %cst_81 = arith.constant dense<0.000000e+00> : vector<16xf32>
    %121 = vector.multi_reduction <add>, %93, %cst_81 [1] : vector<16x256xf32> to vector<16xf32>
    %122 = vector.shape_cast %121 : vector<16xf32> to vector<16x1xf32>
    %123 = arith.truncf %109 : vector<8x256xf32> to vector<8x256xbf16>
    %124 = arith.truncf %101 : vector<8x256xf32> to vector<8x256xbf16>
    %125 = arith.truncf %93 : vector<16x256xf32> to vector<16x256xbf16>
    %cst_82 = arith.constant dense<0.000000e+00> : vector<8x16xf32>
    %126 = tpu.matmul %123, %125, %cst_82 {dimension_numbers = #tpu.dot_dimension_numbers<[1], [1], [0], [0], [0, 0, 1, 0], [], []>} : vector<8x256xbf16>, vector<16x256xbf16>, vector<8x16xf32> -> vector<8x16xf32>
    %127 = arith.truncf %126 : vector<8x16xf32> to vector<8x16xbf16>
    %cst_83 = arith.constant dense<0.000000e+00> : vector<16x256xf32>
    %128 = tpu.matmul %127, %124, %cst_83 {dimension_numbers = #tpu.dot_dimension_numbers<[0], [0], [1], [1], [0, 1, 1, 1], [], []>} : vector<8x16xbf16>, vector<8x256xbf16>, vector<16x256xf32> -> vector<16x256xf32>
    %129 = vector.broadcast %122 : vector<16x1xf32> to vector<16x256xf32>
    %130 = arith.addf %129, %128 : vector<16x256xf32>
    %c0_84 = arith.constant 0 : index
    %131 = memref.load %arg1[%c0_84] : memref<2xf32, #tpu.memory_space<smem>>
    %132 = vector.broadcast %120 : vector<1x256xf32> to vector<16x256xf32>
    %133 = arith.mulf %130, %132 : vector<16x256xf32>
    %134 = vector.broadcast %131 : f32 to vector<16x256xf32>
    %135 = arith.mulf %134, %133 : vector<16x256xf32>
    %136 = arith.addf %84, %135 : vector<16x256xf32>
    %cst_85 = arith.constant dense<0.000000e+00> : vector<16x16xf32>
    %137 = tpu.matmul %84, %84, %cst_85 {dimension_numbers = #tpu.dot_dimension_numbers<[1], [1], [0], [0], [0, 0, 1, 0], [], []>} : vector<16x256xf32>, vector<16x256xf32>, vector<16x16xf32> -> vector<16x16xf32>
    %cst_86 = arith.constant dense<0xFF800000> : vector<16xf32>
    %138 = vector.multi_reduction <maximumf>, %137, %cst_86 [1] : vector<16x16xf32> to vector<16xf32>
    %139 = vector.shape_cast %138 : vector<16xf32> to vector<16x1xf32>
    %140 = vector.broadcast %139 : vector<16x1xf32> to vector<16x16xf32>
    %141 = arith.subf %140, %137 : vector<16x16xf32>
    %cst_87 = arith.constant dense<0xFF800000> : vector<16xf32>
    %142 = vector.multi_reduction <maximumf>, %141, %cst_87 [1] : vector<16x16xf32> to vector<16xf32>
    %143 = vector.shape_cast %142 : vector<16xf32> to vector<16x1xf32>
    %144 = vector.broadcast %143 : vector<16x1xf32> to vector<16x16xf32>
    %145 = arith.subf %141, %144 : vector<16x16xf32>
    %146 = math.exp %145 : vector<16x16xf32>
    %cst_88 = arith.constant dense<0.000000e+00> : vector<16xf32>
    %147 = vector.multi_reduction <add>, %146, %cst_88 [1] : vector<16x16xf32> to vector<16xf32>
    %148 = vector.shape_cast %147 : vector<16xf32> to vector<16x1xf32>
    %149 = vector.broadcast %148 : vector<16x1xf32> to vector<16x16xf32>
    %150 = arith.divf %146, %149 : vector<16x16xf32>
    %c1_89 = arith.constant 1 : index
    %151 = memref.load %arg1[%c1_89] : memref<2xf32, #tpu.memory_space<smem>>
    %152 = arith.truncf %150 : vector<16x16xf32> to vector<16x16xbf16>
    %cst_90 = arith.constant dense<0.000000e+00> : vector<16x256xf32>
    %153 = tpu.matmul %152, %85, %cst_90 {dimension_numbers = #tpu.dot_dimension_numbers<[1], [0], [0], [1], [0, 0, 1, 1], [], []>} : vector<16x16xbf16>, vector<16x256xbf16>, vector<16x256xf32> -> vector<16x256xf32>
    %154 = vector.broadcast %151 : f32 to vector<16x256xf32>
    %155 = arith.mulf %154, %153 : vector<16x256xf32>
    %156 = arith.addf %155, %84 : vector<16x256xf32>
    %c0_91 = arith.constant 0 : index
    %c0_92 = arith.constant 0 : index
    %157 = vector.load %arg7[%c0_91, %c0_92] : memref<16x16xbf16, #tpu.memory_space<vmem>>, vector<16x16xbf16>
    %158 = arith.truncf %136 : vector<16x256xf32> to vector<16x256xbf16>
    %cst_93 = arith.constant dense<0.000000e+00> : vector<16x256xf32>
    %159 = tpu.matmul %157, %158, %cst_93 {dimension_numbers = #tpu.dot_dimension_numbers<[1], [0], [0], [1], [0, 0, 1, 1], [], []>} : vector<16x16xbf16>, vector<16x256xbf16>, vector<16x256xf32> -> vector<16x256xf32>
    %c0_94 = arith.constant 0 : index
    %c0_95 = arith.constant 0 : index
    %160 = vector.load %arg8[%c0_94, %c0_95] : memref<16x1xf32, #tpu.memory_space<vmem>>, vector<16x1xf32>
    %161 = vector.broadcast %160 : vector<16x1xf32> to vector<16x256xf32>
    %162 = arith.addf %159, %161 : vector<16x256xf32>
    %cst_96 = arith.constant 0.000000e+00 : f32
    %163 = vector.broadcast %cst_96 : f32 to vector<16x256xf32>
    %164 = arith.maximumf %162, %163 : vector<16x256xf32>
    %c0_97 = arith.constant 0 : index
    %c0_98 = arith.constant 0 : index
    %165 = vector.load %arg9[%c0_97, %c0_98] : memref<16x16xbf16, #tpu.memory_space<vmem>>, vector<16x16xbf16>
    %166 = arith.truncf %156 : vector<16x256xf32> to vector<16x256xbf16>
    %cst_99 = arith.constant dense<0.000000e+00> : vector<16x256xf32>
    %167 = tpu.matmul %165, %166, %cst_99 {dimension_numbers = #tpu.dot_dimension_numbers<[1], [0], [0], [1], [0, 0, 1, 1], [], []>} : vector<16x16xbf16>, vector<16x256xbf16>, vector<16x256xf32> -> vector<16x256xf32>
    %c0_100 = arith.constant 0 : index
    %c0_101 = arith.constant 0 : index
    %168 = vector.load %arg10[%c0_100, %c0_101] : memref<16x1xf32, #tpu.memory_space<vmem>>, vector<16x1xf32>
    %169 = vector.broadcast %168 : vector<16x1xf32> to vector<16x256xf32>
    %170 = arith.addf %167, %169 : vector<16x256xf32>
    %cst_102 = arith.constant 0.000000e+00 : f32
    %171 = vector.broadcast %cst_102 : f32 to vector<16x256xf32>
    %172 = arith.maximumf %170, %171 : vector<16x256xf32>
    %c0_103 = arith.constant 0 : index
    %c0_104 = arith.constant 0 : index
    %173 = vector.load %arg11[%c0_103, %c0_104] : memref<16x16xbf16, #tpu.memory_space<vmem>>, vector<16x16xbf16>
    %174 = arith.addf %164, %172 : vector<16x256xf32>
    %175 = arith.truncf %174 : vector<16x256xf32> to vector<16x256xbf16>
    %cst_105 = arith.constant dense<0.000000e+00> : vector<16x256xf32>
    %176 = tpu.matmul %173, %175, %cst_105 {dimension_numbers = #tpu.dot_dimension_numbers<[1], [0], [0], [1], [0, 0, 1, 1], [], []>} : vector<16x16xbf16>, vector<16x256xbf16>, vector<16x256xf32> -> vector<16x256xf32>
    %c0_106 = arith.constant 0 : index
    %c0_107 = arith.constant 0 : index
    %177 = vector.load %arg12[%c0_106, %c0_107] : memref<16x1xf32, #tpu.memory_space<vmem>>, vector<16x1xf32>
    %178 = vector.broadcast %177 : vector<16x1xf32> to vector<16x256xf32>
    %179 = arith.addf %176, %178 : vector<16x256xf32>
    %cst_108 = arith.constant 0.000000e+00 : f32
    %180 = vector.broadcast %cst_108 : f32 to vector<16x256xf32>
    %181 = arith.maximumf %179, %180 : vector<16x256xf32>
    %c0_109 = arith.constant 0 : index
    %c0_110 = arith.constant 0 : index
    %c0_111 = arith.constant 0 : index
    %182 = vector.load %arg13[%c0_109, %c0_110, %c0_111] : memref<1x16x256xf32, #tpu.memory_space<vmem>>, vector<1x16x256xf32>
    %183 = vector.shape_cast %182 : vector<1x16x256xf32> to vector<16x256xf32>
    %184 = vector.shape_cast %181 : vector<16x256xf32> to vector<1x16x256xf32>
    tpu.vector_store %arg13[%c0_109, %c0_110, %c0_111], %184 {strides = array<i32>} : memref<1x16x256xf32, #tpu.memory_space<vmem>>, vector<1x16x256xf32>,
    return
  }
  func.func @transform_0(%arg0: i32) -> i32 {
    %c0_i32 = arith.constant 0 : i32
    %c0_i32_0 = arith.constant 0 : i32
    return %c0_i32 : i32
  }
  func.func @transform_1(%arg0: i32) -> (i32, i32, i32) {
    %c0_i32 = arith.constant 0 : i32
    %c0_i32_0 = arith.constant 0 : i32
    %c0_i32_1 = arith.constant 0 : i32
    return %arg0, %c0_i32, %c0_i32_0 : i32, i32, i32
  }
  func.func @transform_2(%arg0: i32) -> (i32, i32) {
    %c0_i32 = arith.constant 0 : i32
    %c0_i32_0 = arith.constant 0 : i32
    %c0_i32_1 = arith.constant 0 : i32
    return %c0_i32, %c0_i32_0 : i32, i32
  }
  func.func @transform_3(%arg0: i32) -> (i32, i32) {
    %c0_i32 = arith.constant 0 : i32
    %c0_i32_0 = arith.constant 0 : i32
    %c0_i32_1 = arith.constant 0 : i32
    return %c0_i32, %c0_i32_0 : i32, i32
  }
  func.func @transform_4(%arg0: i32) -> (i32, i32) {
    %c0_i32 = arith.constant 0 : i32
    %c0_i32_0 = arith.constant 0 : i32
    %c0_i32_1 = arith.constant 0 : i32
    return %c0_i32, %c0_i32_0 : i32, i32
  }
  func.func @transform_5(%arg0: i32) -> (i32, i32) {
    %c0_i32 = arith.constant 0 : i32
    %c0_i32_0 = arith.constant 0 : i32
    %c0_i32_1 = arith.constant 0 : i32
    return %c0_i32, %c0_i32_0 : i32, i32
  }
  func.func @transform_6(%arg0: i32) -> (i32, i32) {
    %c0_i32 = arith.constant 0 : i32
    %c0_i32_0 = arith.constant 0 : i32
    %c0_i32_1 = arith.constant 0 : i32
    return %c0_i32, %c0_i32_0 : i32, i32
  }
  func.func @transform_7(%arg0: i32) -> (i32, i32) {
    %c0_i32 = arith.constant 0 : i32
    %c0_i32_0 = arith.constant 0 : i32
    %c0_i32_1 = arith.constant 0 : i32
    return %c0_i32, %c0_i32_0 : i32, i32
  }
  func.func @transform_8(%arg0: i32) -> (i32, i32) {
    %c0_i32 = arith.constant 0 : i32
    %c0_i32_0 = arith.constant 0 : i32
    %c0_i32_1 = arith.constant 0 : i32
    return %c0_i32, %c0_i32_0 : i32, i32
  }
  func.func @transform_9(%arg0: i32) -> (i32, i32) {
    %c0_i32 = arith.constant 0 : i32
    %c0_i32_0 = arith.constant 0 : i32
    %c0_i32_1 = arith.constant 0 : i32
    return %c0_i32, %c0_i32_0 : i32, i32
  }
  func.func @transform_10(%arg0: i32) -> (i32, i32) {
    %c0_i32 = arith.constant 0 : i32
    %c0_i32_0 = arith.constant 0 : i32
    %c0_i32_1 = arith.constant 0 : i32
    return %c0_i32, %c0_i32_0 : i32, i32
  }
  func.func @transform_11(%arg0: i32) -> (i32, i32) {
    %c0_i32 = arith.constant 0 : i32
    %c0_i32_0 = arith.constant 0 : i32
    %c0_i32_1 = arith.constant 0 : i32
    return %c0_i32, %c0_i32_0 : i32, i32
  }
  func.func @transform_12(%arg0: i32) -> (i32, i32, i32) {
    %c0_i32 = arith.constant 0 : i32
    %c0_i32_0 = arith.constant 0 : i32
    %c0_i32_1 = arith.constant 0 : i32
    return %arg0, %c0_i32, %c0_i32_0 : i32, i32, i32
  }
}

</mosaic_0001>

<llo_original>
// kernel: pam_cam_layer.1
$region0: #{pam_cam_layer.1}
  #allocation0 [shape = 'u32[]', space=smem, size = 0x4, offset = 0x4, fixed_abs, tag = 'smem constant byte address 0x4 - core index']
  #allocation1 [shape = 'u32[144,128]{1,0:T(1,128)}', space=vmem, size = 0x12000, scoped, tag = 'internal scratch']
  #allocation2 [shape = 'f32[16,384]{1,0:T(8,128)}', space=vmem, size = 0x6000, scoped, tag = 'scratch operand']
  %s0 = inlined_call_operand.vmem [shape: f32[2], index: 0, kind: input, shape index: {}]
  %s1 = inlined_call_operand.vmem [shape: f32[2,16,256], index: 1, kind: input, shape index: {}]
  %s2 = inlined_call_operand.vmem [shape: bf16[16,144], index: 2, kind: input, shape index: {}]
  %s3 = inlined_call_operand.vmem [shape: f32[16,1], index: 3, kind: input, shape index: {}]
  %s4 = inlined_call_operand.vmem [shape: bf16[32,16], index: 4, kind: input, shape index: {}]
  %s5 = inlined_call_operand.vmem [shape: f32[32,1], index: 5, kind: input, shape index: {}]
  %s6 = inlined_call_operand.vmem [shape: bf16[16,16], index: 6, kind: input, shape index: {}]
  %s7 = inlined_call_operand.vmem [shape: f32[16,1], index: 7, kind: input, shape index: {}]
  %s8 = inlined_call_operand.vmem [shape: bf16[16,16], index: 8, kind: input, shape index: {}]
  %s9 = inlined_call_operand.vmem [shape: f32[16,1], index: 9, kind: input, shape index: {}]
  %s10 = inlined_call_operand.vmem [shape: bf16[16,16], index: 10, kind: input, shape index: {}]
  %s11 = inlined_call_operand.vmem [shape: f32[16,1], index: 11, kind: input, shape index: {}]
  %s12 = inlined_call_operand.vmem [shape: f32[2,16,256], index: 12, kind: output, shape index: {}]
  %s13 = sld [smem:[#allocation0]]
  $region85: #{pam_cam_layer.1} parent=0
    _
  %s15 = ssub.s32 1, %s13
  %s16 = scalar_select 0, %s15, %s13
  $region1: #{pam_cam_layer.1} parent=0
    #allocation3 [shape = 'u8[512]{0}', space=smem, size = 0x200, scoped, tag = 'input window, operand 0, single buffered']
    #allocation4 [shape = 's32[2]{0}', space=sflag, size = 0x8, scoped, tag = 'scoped memory for pam_cam_layer.1']
    %17 = vsyncpa [#allocation4], 0
    loop: start=0, step=1, limit=4
    $region2: #{pam_cam_layer.1} parent=1 // loop_pre_header
      _
    $region3: #{pam_cam_layer.1} parent=1 // loop_header
      %s19 = sphi 0, %s23
      %p20 = scmp.ge.s32.totalorder %s19, 4
      %s27 = sphi 0, %s27
      %s29 = sphi 0, %s27
      %s30 = sphi 0, %s29
      %s44 = sphi 0, %s30
      %s50 = sphi 0, %s52
      %s53 = sphi 0, %s50
      %s54 = sphi 0, %s53
      %s70 = sphi 0, %s54
      %s74 = sphi 0, %s74
      %s76 = sphi 0, %s74
      %s77 = sphi 0, %s76
      %s91 = sphi 0, %s77
      %s95 = sphi 0, %s95
      %s97 = sphi 0, %s95
      %s98 = sphi 0, %s97
      %s112 = sphi 0, %s98
      %s116 = sphi 0, %s116
      %s118 = sphi 0, %s116
      %s119 = sphi 0, %s118
      %s133 = sphi 0, %s119
      %s137 = sphi 0, %s137
      %s139 = sphi 0, %s137
      %s140 = sphi 0, %s139
      %s154 = sphi 0, %s140
      %s158 = sphi 0, %s158
      %s160 = sphi 0, %s158
      %s161 = sphi 0, %s160
      %s175 = sphi 0, %s161
      %s179 = sphi 0, %s179
      %s181 = sphi 0, %s179
      %s182 = sphi 0, %s181
      %s196 = sphi 0, %s182
      %s200 = sphi 0, %s200
      %s202 = sphi 0, %s200
      %s203 = sphi 0, %s202
      %s217 = sphi 0, %s203
      %s221 = sphi 0, %s221
      %s223 = sphi 0, %s221
      %s224 = sphi 0, %s223
      %s238 = sphi 0, %s224
      %s242 = sphi 0, %s242
      %s244 = sphi 0, %s242
      %s245 = sphi 0, %s244
      %s259 = sphi 0, %s245
      %s263 = sphi 0, %s263
      %s265 = sphi 0, %s263
      %s266 = sphi 0, %s265
      %s280 = sphi 0, %s266
      %s286 = sphi 0, %s288
      %s289 = sphi 0, %s286
      %s290 = sphi 0, %s289
      %s306 = sphi 0, %s290
    $region4: #{pam_cam_layer.1} parent=1 // loop_header_branch
      %22 = sbr.rel (%p20) target = $region8
    $region5: #{pam_cam_layer.1} parent=1 // loop_body
      %s24 = ssub.s32 %s19, 1
      %s25 = ssub.s32 %s19, 2
      %s26 = sadd.s32 %s19, 1
      %s28 = sadd.s32 %s27, 1
      %p31 = scmp.eq.s32.totalorder %s19, 1
      %p32 = scmp.ne.s32.totalorder %s27, %s29
      %p33 = scmp.eq.s32.totalorder %s19, 0
      %p34 = por %p32, %p33
      %p35 = scmp.ne.s32.totalorder %s27, %s29
      %p36 = scmp.eq.s32.totalorder %s24, 1
      %p37 = por %p35, %p36
      %p38 = scmp.ne.s32.totalorder %s29, %s30
      %p39 = scmp.eq.s32.totalorder %s24, 0
      %p40 = por %p38, %p39
      %p41 = scmp.ne.s32.totalorder %s29, %s30
      %p42 = scmp.eq.s32.totalorder %s25, 1
      %p43 = por %p41, %p42
      %p45 = scmp.ne.s32.totalorder %s30, %s44
      %p46 = scmp.eq.s32.totalorder %s25, 0
      %p47 = por %p45, %p46
      %s48 = ssub.s32 %s19, %s26
      %p49 = scmp.eq.s32.totalorder %s48, 0
      %s51 = sadd.s32 %s50, 1
      %s52 = scalar_select %p49, %s50, %s51
      %p55 = pneg %p49
      %p56 = scmp.eq.s32.totalorder %s19, 1
      %p57 = por %p55, %p56
      %p58 = scmp.ne.s32.totalorder %s50, %s53
      %p59 = scmp.eq.s32.totalorder %s19, 0
      %p60 = por %p58, %p59
      %p61 = scmp.ne.s32.totalorder %s50, %s53
      %p62 = scmp.eq.s32.totalorder %s24, 1
      %p63 = por %p61, %p62
      %p64 = scmp.ne.s32.totalorder %s53, %s54
      %p65 = scmp.eq.s32.totalorder %s24, 0
      %p66 = por %p64, %p65
      %p67 = scmp.ne.s32.totalorder %s53, %s54
      %p68 = scmp.eq.s32.totalorder %s25, 1
      %p69 = por %p67, %p68
      %p71 = scmp.ne.s32.totalorder %s54, %s70
      %p72 = scmp.eq.s32.totalorder %s25, 0
      %p73 = por %p71, %p72
      %s75 = sadd.s32 %s74, 1
      %p78 = scmp.eq.s32.totalorder %s19, 1
      %p79 = scmp.ne.s32.totalorder %s74, %s76
      %p80 = scmp.eq.s32.totalorder %s19, 0
      %p81 = por %p79, %p80
      %p82 = scmp.ne.s32.totalorder %s74, %s76
      %p83 = scmp.eq.s32.totalorder %s24, 1
      %p84 = por %p82, %p83
      %p85 = scmp.ne.s32.totalorder %s76, %s77
      %p86 = scmp.eq.s32.totalorder %s24, 0
      %p87 = por %p85, %p86
      %p88 = scmp.ne.s32.totalorder %s76, %s77
      %p89 = scmp.eq.s32.totalorder %s25, 1
      %p90 = por %p88, %p89
      %p92 = scmp.ne.s32.totalorder %s77, %s91
      %p93 = scmp.eq.s32.totalorder %s25, 0
      %p94 = por %p92, %p93
      %s96 = sadd.s32 %s95, 1
      %p99 = scmp.eq.s32.totalorder %s19, 1
      %p100 = scmp.ne.s32.totalorder %s95, %s97
      %p101 = scmp.eq.s32.totalorder %s19, 0
      %p102 = por %p100, %p101
      %p103 = scmp.ne.s32.totalorder %s95, %s97
      %p104 = scmp.eq.s32.totalorder %s24, 1
      %p105 = por %p103, %p104
      %p106 = scmp.ne.s32.totalorder %s97, %s98
      %p107 = scmp.eq.s32.totalorder %s24, 0
      %p108 = por %p106, %p107
      %p109 = scmp.ne.s32.totalorder %s97, %s98
      %p110 = scmp.eq.s32.totalorder %s25, 1
      %p111 = por %p109, %p110
      %p113 = scmp.ne.s32.totalorder %s98, %s112
      %p114 = scmp.eq.s32.totalorder %s25, 0
      %p115 = por %p113, %p114
      %s117 = sadd.s32 %s116, 1
      %p120 = scmp.eq.s32.totalorder %s19, 1
      %p121 = scmp.ne.s32.totalorder %s116, %s118
      %p122 = scmp.eq.s32.totalorder %s19, 0
      %p123 = por %p121, %p122
      %p124 = scmp.ne.s32.totalorder %s116, %s118
      %p125 = scmp.eq.s32.totalorder %s24, 1
      %p126 = por %p124, %p125
      %p127 = scmp.ne.s32.totalorder %s118, %s119
      %p128 = scmp.eq.s32.totalorder %s24, 0
      %p129 = por %p127, %p128
      %p130 = scmp.ne.s32.totalorder %s118, %s119
      %p131 = scmp.eq.s32.totalorder %s25, 1
      %p132 = por %p130, %p131
      %p134 = scmp.ne.s32.totalorder %s119, %s133
      %p135 = scmp.eq.s32.totalorder %s25, 0
      %p136 = por %p134, %p135
      %s138 = sadd.s32 %s137, 1
      %p141 = scmp.eq.s32.totalorder %s19, 1
      %p142 = scmp.ne.s32.totalorder %s137, %s139
      %p143 = scmp.eq.s32.totalorder %s19, 0
      %p144 = por %p142, %p143
      %p145 = scmp.ne.s32.totalorder %s137, %s139
      %p146 = scmp.eq.s32.totalorder %s24, 1
      %p147 = por %p145, %p146
      %p148 = scmp.ne.s32.totalorder %s139, %s140
      %p149 = scmp.eq.s32.totalorder %s24, 0
      %p150 = por %p148, %p149
      %p151 = scmp.ne.s32.totalorder %s139, %s140
      %p152 = scmp.eq.s32.totalorder %s25, 1
      %p153 = por %p151, %p152
      %p155 = scmp.ne.s32.totalorder %s140, %s154
      %p156 = scmp.eq.s32.totalorder %s25, 0
      %p157 = por %p155, %p156
      %s159 = sadd.s32 %s158, 1
      %p162 = scmp.eq.s32.totalorder %s19, 1
      %p163 = scmp.ne.s32.totalorder %s158, %s160
      %p164 = scmp.eq.s32.totalorder %s19, 0
      %p165 = por %p163, %p164
      %p166 = scmp.ne.s32.totalorder %s158, %s160
      %p167 = scmp.eq.s32.totalorder %s24, 1
      %p168 = por %p166, %p167
      %p169 = scmp.ne.s32.totalorder %s160, %s161
      %p170 = scmp.eq.s32.totalorder %s24, 0
      %p171 = por %p169, %p170
      %p172 = scmp.ne.s32.totalorder %s160, %s161
      %p173 = scmp.eq.s32.totalorder %s25, 1
      %p174 = por %p172, %p173
      %p176 = scmp.ne.s32.totalorder %s161, %s175
      %p177 = scmp.eq.s32.totalorder %s25, 0
      %p178 = por %p176, %p177
      %s180 = sadd.s32 %s179, 1
      %p183 = scmp.eq.s32.totalorder %s19, 1
      %p184 = scmp.ne.s32.totalorder %s179, %s181
      %p185 = scmp.eq.s32.totalorder %s19, 0
      %p186 = por %p184, %p185
      %p187 = scmp.ne.s32.totalorder %s179, %s181
      %p188 = scmp.eq.s32.totalorder %s24, 1
      %p189 = por %p187, %p188
      %p190 = scmp.ne.s32.totalorder %s181, %s182
      %p191 = scmp.eq.s32.totalorder %s24, 0
      %p192 = por %p190, %p191
      %p193 = scmp.ne.s32.totalorder %s181, %s182
      %p194 = scmp.eq.s32.totalorder %s25, 1
      %p195 = por %p193, %p194
      %p197 = scmp.ne.s32.totalorder %s182, %s196
      %p198 = scmp.eq.s32.totalorder %s25, 0
      %p199 = por %p197, %p198
      %s201 = sadd.s32 %s200, 1
      %p204 = scmp.eq.s32.totalorder %s19, 1
      %p205 = scmp.ne.s32.totalorder %s200, %s202
      %p206 = scmp.eq.s32.totalorder %s19, 0
      %p207 = por %p205, %p206
      %p208 = scmp.ne.s32.totalorder %s200, %s202
      %p209 = scmp.eq.s32.totalorder %s24, 1
      %p210 = por %p208, %p209
      %p211 = scmp.ne.s32.totalorder %s202, %s203
      %p212 = scmp.eq.s32.totalorder %s24, 0
      %p213 = por %p211, %p212
      %p214 = scmp.ne.s32.totalorder %s202, %s203
      %p215 = scmp.eq.s32.totalorder %s25, 1
      %p216 = por %p214, %p215
      %p218 = scmp.ne.s32.totalorder %s203, %s217
      %p219 = scmp.eq.s32.totalorder %s25, 0
      %p220 = por %p218, %p219
      %s222 = sadd.s32 %s221, 1
      %p225 = scmp.eq.s32.totalorder %s19, 1
      %p226 = scmp.ne.s32.totalorder %s221, %s223
      %p227 = scmp.eq.s32.totalorder %s19, 0
      %p228 = por %p226, %p227
      %p229 = scmp.ne.s32.totalorder %s221, %s223
      %p230 = scmp.eq.s32.totalorder %s24, 1
      %p231 = por %p229, %p230
      %p232 = scmp.ne.s32.totalorder %s223, %s224
      %p233 = scmp.eq.s32.totalorder %s24, 0
      %p234 = por %p232, %p233
      %p235 = scmp.ne.s32.totalorder %s223, %s224
      %p236 = scmp.eq.s32.totalorder %s25, 1
      %p237 = por %p235, %p236
      %p239 = scmp.ne.s32.totalorder %s224, %s238
      %p240 = scmp.eq.s32.totalorder %s25, 0
      %p241 = por %p239, %p240
      %s243 = sadd.s32 %s242, 1
      %p246 = scmp.eq.s32.totalorder %s19, 1
      %p247 = scmp.ne.s32.totalorder %s242, %s244
      %p248 = scmp.eq.s32.totalorder %s19, 0
      %p249 = por %p247, %p248
      %p250 = scmp.ne.s32.totalorder %s242, %s244
      %p251 = scmp.eq.s32.totalorder %s24, 1
      %p252 = por %p250, %p251
      %p253 = scmp.ne.s32.totalorder %s244, %s245
      %p254 = scmp.eq.s32.totalorder %s24, 0
      %p255 = por %p253, %p254
      %p256 = scmp.ne.s32.totalorder %s244, %s245
      %p257 = scmp.eq.s32.totalorder %s25, 1
      %p258 = por %p256, %p257
      %p260 = scmp.ne.s32.totalorder %s245, %s259
      %p261 = scmp.eq.s32.totalorder %s25, 0
      %p262 = por %p260, %p261
      %s264 = sadd.s32 %s263, 1
      %p267 = scmp.eq.s32.totalorder %s19, 1
      %p268 = scmp.ne.s32.totalorder %s263, %s265
      %p269 = scmp.eq.s32.totalorder %s19, 0
      %p270 = por %p268, %p269
      %p271 = scmp.ne.s32.totalorder %s263, %s265
      %p272 = scmp.eq.s32.totalorder %s24, 1
      %p273 = por %p271, %p272
      %p274 = scmp.ne.s32.totalorder %s265, %s266
      %p275 = scmp.eq.s32.totalorder %s24, 0
      %p276 = por %p274, %p275
      %p277 = scmp.ne.s32.totalorder %s265, %s266
      %p278 = scmp.eq.s32.totalorder %s25, 1
      %p279 = por %p277, %p278
      %p281 = scmp.ne.s32.totalorder %s266, %s280
      %p282 = scmp.eq.s32.totalorder %s25, 0
      %p283 = por %p281, %p282
      %s284 = ssub.s32 %s19, %s26
      %p285 = scmp.eq.s32.totalorder %s284, 0
      %s287 = sadd.s32 %s286, 1
      %s288 = scalar_select %p285, %s286, %s287
      %p291 = pneg %p285
      %p292 = scmp.eq.s32.totalorder %s19, 1
      %p293 = por %p291, %p292
      %p294 = scmp.ne.s32.totalorder %s286, %s289
      %p295 = scmp.eq.s32.totalorder %s19, 0
      %p296 = por %p294, %p295
      %p297 = scmp.ne.s32.totalorder %s286, %s289
      %p298 = scmp.eq.s32.totalorder %s24, 1
      %p299 = por %p297, %p298
      %p300 = scmp.ne.s32.totalorder %s289, %s290
      %p301 = scmp.eq.s32.totalorder %s24, 0
      %p302 = por %p300, %p301
      %p303 = scmp.ne.s32.totalorder %s289, %s290
      %p304 = scmp.eq.s32.totalorder %s25, 1
      %p305 = por %p303, %p304
      %p307 = scmp.ne.s32.totalorder %s290, %s306
      %p308 = scmp.eq.s32.totalorder %s25, 0
      %p309 = por %p307, %p308
      %p310 = scmp.le.s32.totalorder 1, %s19
      %p311 = scmp.lt.s32.totalorder %s19, 3
      %p312 = pnand %p310, %p311
      %p313 = pneg %p312
      // Predicated region
      $region9: #{pam_cam_layer.1} parent=5 // pred_check
        _
      $region10: #{pam_cam_layer.1} parent=5 // pred_check_branch
        %315 = sbr.rel (%p312) target = $region12
      $region11: #{pam_cam_layer.1} parent=5 // pred_region
        %s316 = ssub.s32 %s19, 1
        // Predicated region
        $region13: #{pam_cam_layer.1} parent=11 // pred_check
          %p317 = pneg %p40
        $region14: #{pam_cam_layer.1} parent=11 // pred_check_branch
          %319 = sbr.rel (%p317) target = $region16
        $region15: #{pam_cam_layer.1} parent=11 // pred_region
          %s321 = ssub.s32 16, 16
          %322 = vsyncadd [#allocation4], %s321
          %s324 = sshll.u32 %s0, 4
          %s325 = int_to_ptr.vmem [resolvable:$true] %s324
          %327 = dma.vmem_to_smem %s325, 16, [#allocation3], [#allocation4]
        $region16: #{pam_cam_layer.1} parent=11 // pred_fallthru
          _
        // Predicated region
        $region17: #{pam_cam_layer.1} parent=11 // pred_check
          %p328 = pneg %p87
        $region18: #{pam_cam_layer.1} parent=11 // pred_check_branch
          %330 = sbr.rel (%p328) target = $region20
        $region19: #{pam_cam_layer.1} parent=11 // pred_region
          _
        $region20: #{pam_cam_layer.1} parent=11 // pred_fallthru
          _
        // Predicated region
        $region21: #{pam_cam_layer.1} parent=11 // pred_check
          %p331 = pneg %p108
        $region22: #{pam_cam_layer.1} parent=11 // pred_check_branch
          %333 = sbr.rel (%p331) target = $region24
        $region23: #{pam_cam_layer.1} parent=11 // pred_region
          _
        $region24: #{pam_cam_layer.1} parent=11 // pred_fallthru
          _
        // Predicated region
        $region25: #{pam_cam_layer.1} parent=11 // pred_check
          %p334 = pneg %p129
        $region26: #{pam_cam_layer.1} parent=11 // pred_check_branch
          %336 = sbr.rel (%p334) target = $region28
        $region27: #{pam_cam_layer.1} parent=11 // pred_region
          _
        $region28: #{pam_cam_layer.1} parent=11 // pred_fallthru
          _
        // Predicated region
        $region29: #{pam_cam_layer.1} parent=11 // pred_check
          %p337 = pneg %p150
        $region30: #{pam_cam_layer.1} parent=11 // pred_check_branch
          %339 = sbr.rel (%p337) target = $region32
        $region31: #{pam_cam_layer.1} parent=11 // pred_region
          _
        $region32: #{pam_cam_layer.1} parent=11 // pred_fallthru
          _
        // Predicated region
        $region33: #{pam_cam_layer.1} parent=11 // pred_check
          %p340 = pneg %p171
        $region34: #{pam_cam_layer.1} parent=11 // pred_check_branch
          %342 = sbr.rel (%p340) target = $region36
        $region35: #{pam_cam_layer.1} parent=11 // pred_region
          _
        $region36: #{pam_cam_layer.1} parent=11 // pred_fallthru
          _
        // Predicated region
        $region37: #{pam_cam_layer.1} parent=11 // pred_check
          %p343 = pneg %p192
        $region38: #{pam_cam_layer.1} parent=11 // pred_check_branch
          %345 = sbr.rel (%p343) target = $region40
        $region39: #{pam_cam_layer.1} parent=11 // pred_region
          _
        $region40: #{pam_cam_layer.1} parent=11 // pred_fallthru
          _
        // Predicated region
        $region41: #{pam_cam_layer.1} parent=11 // pred_check
          %p346 = pneg %p213
        $region42: #{pam_cam_layer.1} parent=11 // pred_check_branch
          %348 = sbr.rel (%p346) target = $region44
        $region43: #{pam_cam_layer.1} parent=11 // pred_region
          _
        $region44: #{pam_cam_layer.1} parent=11 // pred_fallthru
          _
        // Predicated region
        $region45: #{pam_cam_layer.1} parent=11 // pred_check
          %p349 = pneg %p234
        $region46: #{pam_cam_layer.1} parent=11 // pred_check_branch
          %351 = sbr.rel (%p349) target = $region48
        $region47: #{pam_cam_layer.1} parent=11 // pred_region
          _
        $region48: #{pam_cam_layer.1} parent=11 // pred_fallthru
          _
        // Predicated region
        $region49: #{pam_cam_layer.1} parent=11 // pred_check
          %p352 = pneg %p255
        $region50: #{pam_cam_layer.1} parent=11 // pred_check_branch
          %354 = sbr.rel (%p352) target = $region52
        $region51: #{pam_cam_layer.1} parent=11 // pred_region
          _
        $region52: #{pam_cam_layer.1} parent=11 // pred_fallthru
          _
        // Predicated region
        $region53: #{pam_cam_layer.1} parent=11 // pred_check
          %p355 = pneg %p276
        $region54: #{pam_cam_layer.1} parent=11 // pred_check_branch
          %357 = sbr.rel (%p355) target = $region56
        $region55: #{pam_cam_layer.1} parent=11 // pred_region
          _
        $region56: #{pam_cam_layer.1} parent=11 // pred_fallthru
          _
      $region12: #{pam_cam_layer.1} parent=5 // pred_fallthru
        _
      %p358 = scmp.lt.s32.totalorder %s19, 2
      // Predicated region
      $region57: #{pam_cam_layer.1} parent=5 // pred_check
        %p359 = pneg %p358
      $region58: #{pam_cam_layer.1} parent=5 // pred_check_branch
        %361 = sbr.rel (%p359) target = $region60
      $region59: #{pam_cam_layer.1} parent=5 // pred_region
        // Predicated region
        $region61: #{pam_cam_layer.1} parent=59 // pred_check
          %p362 = pneg %p60
        $region62: #{pam_cam_layer.1} parent=59 // pred_check_branch
          %364 = sbr.rel (%p362) target = $region64
        $region63: #{pam_cam_layer.1} parent=59 // pred_region
          %p365 = scmp.lt.s32.totalorder %s19, 1
          %s366 = scalar_select %p365, %s19, 1
          %s367 = smul.addr %s366, 4
          %s368 = smul.addr %s367, 8
          %s369 = scalar_lea.vmem %s1, %s368
        $region64: #{pam_cam_layer.1} parent=59 // pred_fallthru
          _
      $region60: #{pam_cam_layer.1} parent=5 // pred_fallthru
        _
      %p370 = scmp.le.s32.totalorder 1, %s19
      %p371 = scmp.lt.s32.totalorder %s19, 3
      %p372 = pnand %p370, %p371
      %p373 = pneg %p372
      // Predicated region
      $region65: #{pam_cam_layer.1} parent=5 // pred_check
        _
      $region66: #{pam_cam_layer.1} parent=5 // pred_check_branch
        %375 = sbr.rel (%p372) target = $region68
      $region67: #{pam_cam_layer.1} parent=5 // pred_region
        %s376 = ssub.s32 %s19, 1
        // Predicated region
        $region69: #{pam_cam_layer.1} parent=67 // pred_check
          %p377 = pneg %p40
        $region70: #{pam_cam_layer.1} parent=67 // pred_check_branch
          %379 = sbr.rel (%p377) target = $region72
        $region71: #{pam_cam_layer.1} parent=67 // pred_region
          %380 = dma.done [#allocation4], 16
        $region72: #{pam_cam_layer.1} parent=67 // pred_fallthru
          _
        %381 = sfence
        %p382 = pneg %p40
        %p383 = pneg %p37
        %p384 = scmp.lt.s32.totalorder %s24, 1
        %s385 = scalar_select %p384, %s24, 1
        %s386 = smul.addr %s385, 4
        %s387 = smul.addr %s386, 8
        %s388 = scalar_lea.vmem %s1, %s387
        %p389 = pneg %p66
        %p390 = pneg %p63
        %p391 = pneg %p87
        %p392 = pneg %p84
        %p393 = pneg %p108
        %p394 = pneg %p105
        %p395 = pneg %p129
        %p396 = pneg %p126
        %p397 = pneg %p150
        %p398 = pneg %p147
        %p399 = pneg %p171
        %p400 = pneg %p168
        %p401 = pneg %p192
        %p402 = pneg %p189
        %p403 = pneg %p213
        %p404 = pneg %p210
        %p405 = pneg %p234
        %p406 = pneg %p231
        %p407 = pneg %p255
        %p408 = pneg %p252
        %p409 = pneg %p276
        %p410 = pneg %p273
        %p411 = pneg %p302
        %p412 = pneg %p299
        %p413 = scmp.lt.s32.totalorder %s24, 1
        %s414 = scalar_select %p413, %s24, 1
        %s415 = smul.addr %s414, 4
        %s416 = smul.addr %s415, 8
        %s417 = scalar_lea.vmem %s12, %s416
        %p418 = scmp.lt.s32.totalorder %s24, 1
        %s419 = scalar_select %p418, %s24, 1
        %s420 = smul.addr %s419, 4
        %s421 = smul.addr %s420, 8
        %s422 = scalar_lea.vmem %s1, %s421
        %p423 = scmp.lt.s32.totalorder %s24, 1
        %s424 = scalar_select %p423, %s24, 1
        %s425 = smul.addr %s424, 4
        %s426 = smul.addr %s425, 8
        %s427 = scalar_lea.vmem %s12, %s426
        %429 = vst [vmem:[#allocation2] sm:$0xff] 0.0
        %430 = vst [vmem:[#allocation2 + $0x8] sm:$0xff] 0.0
        %431 = vst [vmem:[#allocation2 + $0x10] sm:$0xff] 0.0
        %432 = vst [vmem:[#allocation2 + $0x18] sm:$0xff] 0.0
        %433 = vst [vmem:[#allocation2 + $0x20] sm:$0xff] 0.0
        %434 = vst [vmem:[#allocation2 + $0x28] sm:$0xff] 0.0
        %v435 = vld [vmem:[%s422] sm:$0xff]
        %v436 = vld [vmem:[%s422 + $0x10] sm:$0xff]
        %439 = vrot.lane.b32.xlu0 %v435, 38
        %v440 = vpop.permute.xlu0 %439
        %441 = vrot.lane.b32.xlu0 %v436, 38
        %v442 = vpop.permute.xlu0 %441
        %vm445 = vcmask 441648
        %446 = vst.msk [vmem:[#allocation2] sm:$0xff] %vm445, %v440
        %447 = vst.msk [vmem:[#allocation2 + $0x18] sm:$0xff] %vm445, %v442
        %v448 = vld [vmem:[%s422] sm:$0xff]
        %v449 = vld [vmem:[%s422 + $0x10] sm:$0xff]
        %452 = vrot.lane.b32.xlu0 %v448, 40
        %v453 = vpop.permute.xlu0 %452
        %454 = vrot.lane.b32.xlu0 %v449, 40
        %v455 = vpop.permute.xlu0 %454
        %vm458 = vcmask 589248
        %459 = vst.msk [vmem:[#allocation2] sm:$0xff] %vm458, %v453
        %460 = vst.msk [vmem:[#allocation2 + $0x18] sm:$0xff] %vm458, %v455
        %v461 = vld [vmem:[%s422] sm:$0xff]
        %v462 = vld [vmem:[%s422 + $0x10] sm:$0xff]
        %465 = vrot.lane.b32.xlu0 %v461, 42
        %v466 = vpop.permute.xlu0 %465
        %467 = vrot.lane.b32.xlu0 %v462, 42
        %v468 = vpop.permute.xlu0 %467
        %vm471 = vcmask 736848
        %472 = vst.msk [vmem:[#allocation2] sm:$0xff] %vm471, %v466
        %473 = vst.msk [vmem:[#allocation2 + $0x18] sm:$0xff] %vm471, %v468
        %v474 = vld [vmem:[%s422] sm:$0xff]
        %v475 = vld [vmem:[%s422 + $0x10] sm:$0xff]
        %478 = vrot.lane.b32.xlu0 %v474, 44
        %v479 = vpop.permute.xlu0 %478
        %480 = vrot.lane.b32.xlu0 %v475, 44
        %v481 = vpop.permute.xlu0 %480
        %vm484 = vcmask 884448
        %485 = vst.msk [vmem:[#allocation2] sm:$0xff] %vm484, %v479
        %486 = vst.msk [vmem:[#allocation2 + $0x18] sm:$0xff] %vm484, %v481
        %v487 = vld [vmem:[%s422] sm:$0xff]
        %v488 = vld [vmem:[%s422 + $0x10] sm:$0xff]
        %491 = vrot.lane.b32.xlu0 %v487, 46
        %v492 = vpop.permute.xlu0 %491
        %493 = vrot.lane.b32.xlu0 %v488, 46
        %v494 = vpop.permute.xlu0 %493
        %vm497 = vcmask 1032048
        %498 = vst.msk [vmem:[#allocation2] sm:$0xff] %vm497, %v492
        %499 = vst.msk [vmem:[#allocation2 + $0x18] sm:$0xff] %vm497, %v494
        %v500 = vld [vmem:[%s422] sm:$0xff]
        %v501 = vld [vmem:[%s422 + $0x10] sm:$0xff]
        %504 = vrot.lane.b32.xlu0 %v500, 48
        %v505 = vpop.permute.xlu0 %504
        %506 = vrot.lane.b32.xlu0 %v501, 48
        %v507 = vpop.permute.xlu0 %506
        %vm510 = vcmask 130048
        %511 = vst.msk [vmem:[#allocation2 + $0x8] sm:$0xff] %vm510, %v505
        %512 = vst.msk [vmem:[#allocation2 + $0x20] sm:$0xff] %vm510, %v507
        %v513 = vld [vmem:[%s422] sm:$0xff]
        %v514 = vld [vmem:[%s422 + $0x10] sm:$0xff]
        %517 = vrot.lane.b32.xlu0 %v513, 50
        %v518 = vpop.permute.xlu0 %517
        %519 = vrot.lane.b32.xlu0 %v514, 50
        %v520 = vpop.permute.xlu0 %519
        %vm523 = vcmask 277648
        %524 = vst.msk [vmem:[#allocation2 + $0x8] sm:$0xff] %vm523, %v518
        %525 = vst.msk [vmem:[#allocation2 + $0x20] sm:$0xff] %vm523, %v520
        %v526 = vld [vmem:[%s422] sm:$0xff]
        %v527 = vld [vmem:[%s422 + $0x10] sm:$0xff]
        %530 = vrot.lane.b32.xlu0 %v526, 52
        %v531 = vpop.permute.xlu0 %530
        %532 = vrot.lane.b32.xlu0 %v527, 52
        %v533 = vpop.permute.xlu0 %532
        %vm536 = vcmask 425248
        %537 = vst.msk [vmem:[#allocation2 + $0x8] sm:$0xff] %vm536, %v531
        %538 = vst.msk [vmem:[#allocation2 + $0x20] sm:$0xff] %vm536, %v533
        %v539 = vld [vmem:[%s422 + $0x8] sm:$0xff]
        %v540 = vld [vmem:[%s422 + $0x18] sm:$0xff]
        %543 = vrot.lane.b32.xlu0 %v539, 54
        %v544 = vpop.permute.xlu0 %543
        %545 = vrot.lane.b32.xlu0 %v540, 54
        %v546 = vpop.permute.xlu0 %545
        %vm549 = vcmask 572848
        %550 = vst.msk [vmem:[#allocation2 + $0x8] sm:$0xff] %vm549, %v544
        %551 = vst.msk [vmem:[#allocation2 + $0x20] sm:$0xff] %vm549, %v546
        %v552 = vld [vmem:[%s422 + $0x8] sm:$0xff]
        %v553 = vld [vmem:[%s422 + $0x18] sm:$0xff]
        %556 = vrot.lane.b32.xlu0 %v552, 56
        %v557 = vpop.permute.xlu0 %556
        %558 = vrot.lane.b32.xlu0 %v553, 56
        %v559 = vpop.permute.xlu0 %558
        %vm562 = vcmask 720448
        %563 = vst.msk [vmem:[#allocation2 + $0x8] sm:$0xff] %vm562, %v557
        %564 = vst.msk [vmem:[#allocation2 + $0x20] sm:$0xff] %vm562, %v559
        %v565 = vld [vmem:[%s422 + $0x8] sm:$0xff]
        %v566 = vld [vmem:[%s422 + $0x18] sm:$0xff]
        %569 = vrot.lane.b32.xlu0 %v565, 58
        %v570 = vpop.permute.xlu0 %569
        %571 = vrot.lane.b32.xlu0 %v566, 58
        %v572 = vpop.permute.xlu0 %571
        %vm575 = vcmask 868048
        %576 = vst.msk [vmem:[#allocation2 + $0x8] sm:$0xff] %vm575, %v570
        %577 = vst.msk [vmem:[#allocation2 + $0x20] sm:$0xff] %vm575, %v572
        %v578 = vld [vmem:[%s422 + $0x8] sm:$0xff]
        %v579 = vld [vmem:[%s422 + $0x18] sm:$0xff]
        %582 = vrot.lane.b32.xlu0 %v578, 60
        %v583 = vpop.permute.xlu0 %582
        %584 = vrot.lane.b32.xlu0 %v579, 60
        %v585 = vpop.permute.xlu0 %584
        %vm588 = vcmask 1015648
        %589 = vst.msk [vmem:[#allocation2 + $0x8] sm:$0xff] %vm588, %v583
        %590 = vst.msk [vmem:[#allocation2 + $0x20] sm:$0xff] %vm588, %v585
        %v591 = vld [vmem:[%s422 + $0x8] sm:$0xff]
        %v592 = vld [vmem:[%s422 + $0x18] sm:$0xff]
        %595 = vrot.lane.b32.xlu0 %v591, 62
        %v596 = vpop.permute.xlu0 %595
        %597 = vrot.lane.b32.xlu0 %v592, 62
        %v598 = vpop.permute.xlu0 %597
        %vm601 = vcmask 1048560
        %602 = vst.msk [vmem:[#allocation2 + $0x8] sm:$0xff] %vm601, %v596
        %vm603 = vcmask 113664
        %604 = vst.msk [vmem:[#allocation2 + $0x10] sm:$0xff] %vm603, %v596
        %605 = vst.msk [vmem:[#allocation2 + $0x20] sm:$0xff] %vm601, %v598
        %606 = vst.msk [vmem:[#allocation2 + $0x28] sm:$0xff] %vm603, %v598
        %v607 = vld [vmem:[%s422 + $0x8] sm:$0xff]
        %v608 = vld [vmem:[%s422 + $0x18] sm:$0xff]
        %611 = vrot.lane.b32.xlu0 %v607, 64
        %v612 = vpop.permute.xlu0 %611
        %613 = vrot.lane.b32.xlu0 %v608, 64
        %v614 = vpop.permute.xlu0 %613
        %vm617 = vcmask 261248
        %618 = vst.msk [vmem:[#allocation2 + $0x10] sm:$0xff] %vm617, %v612
        %619 = vst.msk [vmem:[#allocation2 + $0x28] sm:$0xff] %vm617, %v614
        %v620 = vld [vmem:[%s422 + $0x8] sm:$0xff]
        %v621 = vld [vmem:[%s422 + $0x18] sm:$0xff]
        %624 = vrot.lane.b32.xlu0 %v620, 66
        %v625 = vpop.permute.xlu0 %624
        %626 = vrot.lane.b32.xlu0 %v621, 66
        %v627 = vpop.permute.xlu0 %626
        %vm630 = vcmask 408848
        %631 = vst.msk [vmem:[#allocation2 + $0x10] sm:$0xff] %vm630, %v625
        %632 = vst.msk [vmem:[#allocation2 + $0x28] sm:$0xff] %vm630, %v627
        %v633 = vld [vmem:[%s422 + $0x8] sm:$0xff]
        %v634 = vld [vmem:[%s422 + $0x18] sm:$0xff]
        %637 = vrot.lane.b32.xlu0 %v633, 68
        %v638 = vpop.permute.xlu0 %637
        %639 = vrot.lane.b32.xlu0 %v634, 68
        %v640 = vpop.permute.xlu0 %639
        %vm643 = vcmask 556448
        %644 = vst.msk [vmem:[#allocation2 + $0x10] sm:$0xff] %vm643, %v638
        %645 = vst.msk [vmem:[#allocation2 + $0x28] sm:$0xff] %vm643, %v640
        %v646 = vld [vmem:[#allocation2] sm:$0xff]
        %v647 = vld [vmem:[#allocation2 + $0x8] sm:$0xff]
        %v648 = vld [vmem:[#allocation2 + $0x10] sm:$0xff]
        %v649 = vld [vmem:[#allocation2 + $0x18] sm:$0xff]
        %v650 = vld [vmem:[#allocation2 + $0x20] sm:$0xff]
        %v651 = vld [vmem:[#allocation2 + $0x28] sm:$0xff]
        %658 = vrot.lane.b32.xlu0 %v646, 127
        %v659 = vpop.permute.xlu0 %658
        %660 = vrot.lane.b32.xlu0 %v647, 127
        %v661 = vpop.permute.xlu0 %660
        %662 = vrot.lane.b32.xlu0 %v648, 127
        %v663 = vpop.permute.xlu0 %662
        %664 = vrot.lane.b32.xlu0 %v649, 127
        %v665 = vpop.permute.xlu0 %664
        %666 = vrot.lane.b32.xlu0 %v650, 127
        %v667 = vpop.permute.xlu0 %666
        %668 = vrot.lane.b32.xlu0 %v651, 127
        %v669 = vpop.permute.xlu0 %668
        %vm670 = vcmask 1039360
        %v671 = vsel %vm670, %v659, %v661
        %v672 = vsel %vm670, %v661, %v663
        %v673 = vsel %vm670, %v665, %v667
        %v674 = vsel %vm670, %v667, %v669
        %681 = vrot.lane.b32.xlu0 %v646, 126
        %v682 = vpop.permute.xlu0 %681
        %683 = vrot.lane.b32.xlu0 %v647, 126
        %v684 = vpop.permute.xlu0 %683
        %685 = vrot.lane.b32.xlu0 %v648, 126
        %v686 = vpop.permute.xlu0 %685
        %687 = vrot.lane.b32.xlu0 %v649, 126
        %v688 = vpop.permute.xlu0 %687
        %689 = vrot.lane.b32.xlu0 %v650, 126
        %v690 = vpop.permute.xlu0 %689
        %691 = vrot.lane.b32.xlu0 %v651, 126
        %v692 = vpop.permute.xlu0 %691
        %vm693 = vcmask 1031168
        %v694 = vsel %vm693, %v682, %v684
        %v695 = vsel %vm693, %v684, %v686
        %v696 = vsel %vm693, %v688, %v690
        %v697 = vsel %vm693, %v690, %v692
        %704 = vrot.lane.b32.xlu0 %v646, 110
        %v705 = vpop.permute.xlu0 %704
        %706 = vrot.lane.b32.xlu0 %v647, 110
        %v707 = vpop.permute.xlu0 %706
        %708 = vrot.lane.b32.xlu0 %v648, 110
        %v709 = vpop.permute.xlu0 %708
        %710 = vrot.lane.b32.xlu0 %v649, 110
        %v711 = vpop.permute.xlu0 %710
        %712 = vrot.lane.b32.xlu0 %v650, 110
        %v713 = vpop.permute.xlu0 %712
        %714 = vrot.lane.b32.xlu0 %v651, 110
        %v715 = vpop.permute.xlu0 %714
        %vm716 = vcmask 900096
        %v717 = vsel %vm716, %v705, %v707
        %v718 = vsel %vm716, %v707, %v709
        %v719 = vsel %vm716, %v711, %v713
        %v720 = vsel %vm716, %v713, %v715
        %727 = vrot.lane.b32.xlu0 %v646, 109
        %v728 = vpop.permute.xlu0 %727
        %729 = vrot.lane.b32.xlu0 %v647, 109
        %v730 = vpop.permute.xlu0 %729
        %731 = vrot.lane.b32.xlu0 %v648, 109
        %v732 = vpop.permute.xlu0 %731
        %733 = vrot.lane.b32.xlu0 %v649, 109
        %v734 = vpop.permute.xlu0 %733
        %735 = vrot.lane.b32.xlu0 %v650, 109
        %v736 = vpop.permute.xlu0 %735
        %737 = vrot.lane.b32.xlu0 %v651, 109
        %v738 = vpop.permute.xlu0 %737
        %vm739 = vcmask 891904
        %v740 = vsel %vm739, %v728, %v730
        %v741 = vsel %vm739, %v730, %v732
        %v742 = vsel %vm739, %v734, %v736
        %v743 = vsel %vm739, %v736, %v738
        %750 = vrot.lane.b32.xlu0 %v646, 108
        %v751 = vpop.permute.xlu0 %750
        %752 = vrot.lane.b32.xlu0 %v647, 108
        %v753 = vpop.permute.xlu0 %752
        %754 = vrot.lane.b32.xlu0 %v648, 108
        %v755 = vpop.permute.xlu0 %754
        %756 = vrot.lane.b32.xlu0 %v649, 108
        %v757 = vpop.permute.xlu0 %756
        %758 = vrot.lane.b32.xlu0 %v650, 108
        %v759 = vpop.permute.xlu0 %758
        %760 = vrot.lane.b32.xlu0 %v651, 108
        %v761 = vpop.permute.xlu0 %760
        %vm762 = vcmask 883712
        %v763 = vsel %vm762, %v751, %v753
        %v764 = vsel %vm762, %v753, %v755
        %v765 = vsel %vm762, %v757, %v759
        %v766 = vsel %vm762, %v759, %v761
        %773 = vrot.lane.b32.xlu0 %v646, 92
        %v774 = vpop.permute.xlu0 %773
        %775 = vrot.lane.b32.xlu0 %v647, 92
        %v776 = vpop.permute.xlu0 %775
        %777 = vrot.lane.b32.xlu0 %v648, 92
        %v778 = vpop.permute.xlu0 %777
        %779 = vrot.lane.b32.xlu0 %v649, 92
        %v780 = vpop.permute.xlu0 %779
        %781 = vrot.lane.b32.xlu0 %v650, 92
        %v782 = vpop.permute.xlu0 %781
        %783 = vrot.lane.b32.xlu0 %v651, 92
        %v784 = vpop.permute.xlu0 %783
        %vm785 = vcmask 752640
        %v786 = vsel %vm785, %v774, %v776
        %v787 = vsel %vm785, %v776, %v778
        %v788 = vsel %vm785, %v780, %v782
        %v789 = vsel %vm785, %v782, %v784
        %796 = vrot.lane.b32.xlu0 %v646, 91
        %v797 = vpop.permute.xlu0 %796
        %798 = vrot.lane.b32.xlu0 %v647, 91
        %v799 = vpop.permute.xlu0 %798
        %800 = vrot.lane.b32.xlu0 %v648, 91
        %v801 = vpop.permute.xlu0 %800
        %802 = vrot.lane.b32.xlu0 %v649, 91
        %v803 = vpop.permute.xlu0 %802
        %804 = vrot.lane.b32.xlu0 %v650, 91
        %v805 = vpop.permute.xlu0 %804
        %806 = vrot.lane.b32.xlu0 %v651, 91
        %v807 = vpop.permute.xlu0 %806
        %vm808 = vcmask 744448
        %v809 = vsel %vm808, %v797, %v799
        %v810 = vsel %vm808, %v799, %v801
        %v811 = vsel %vm808, %v803, %v805
        %v812 = vsel %vm808, %v805, %v807
        %819 = vrot.lane.b32.xlu0 %v646, 90
        %v820 = vpop.permute.xlu0 %819
        %821 = vrot.lane.b32.xlu0 %v647, 90
        %v822 = vpop.permute.xlu0 %821
        %823 = vrot.lane.b32.xlu0 %v648, 90
        %v824 = vpop.permute.xlu0 %823
        %825 = vrot.lane.b32.xlu0 %v649, 90
        %v826 = vpop.permute.xlu0 %825
        %827 = vrot.lane.b32.xlu0 %v650, 90
        %v828 = vpop.permute.xlu0 %827
        %829 = vrot.lane.b32.xlu0 %v651, 90
        %v830 = vpop.permute.xlu0 %829
        %vm831 = vcmask 736256
        %v832 = vsel %vm831, %v820, %v822
        %v833 = vsel %vm831, %v822, %v824
        %v834 = vsel %vm831, %v826, %v828
        %v835 = vsel %vm831, %v828, %v830
        %v842 = vpack.c.bf16 %v649, %v646
        %v843 = vpack.c.bf16 %v650, %v647
        %v844 = vpack.c.bf16 %v651, %v648
        %v845 = vpack.c.bf16 %v673, %v671
        %v846 = vpack.c.bf16 %v674, %v672
        %v847 = vpack.c.bf16 %v669, %v663
        %v848 = vpack.c.bf16 %v696, %v694
        %v849 = vpack.c.bf16 %v697, %v695
        %v850 = vpack.c.bf16 %v692, %v686
        %v851 = vpack.c.bf16 %v719, %v717
        %v852 = vpack.c.bf16 %v720, %v718
        %v853 = vpack.c.bf16 %v715, %v709
        %v854 = vpack.c.bf16 %v742, %v740
        %v855 = vpack.c.bf16 %v743, %v741
        %v856 = vpack.c.bf16 %v738, %v732
        %v857 = vpack.c.bf16 %v765, %v763
        %v858 = vpack.c.bf16 %v766, %v764
        %v859 = vpack.c.bf16 %v761, %v755
        %v860 = vpack.c.bf16 %v788, %v786
        %v861 = vpack.c.bf16 %v789, %v787
        %v862 = vpack.c.bf16 %v784, %v778
        %v863 = vpack.c.bf16 %v811, %v809
        %v864 = vpack.c.bf16 %v812, %v810
        %v865 = vpack.c.bf16 %v807, %v801
        %v866 = vpack.c.bf16 %v834, %v832
        %v867 = vpack.c.bf16 %v835, %v833
        %v868 = vpack.c.bf16 %v830, %v824
        %v869 = vld [vmem:[%s2] sm:$0xff]
        %v870 = vld [vmem:[%s2 + $0x8] sm:$0xff]
        %v873 = vunpack.c.l.b16 %v869
        %v874 = vunpack.c.h.b16 %v869
        %v875 = vunpack.c.l.b16 %v870
        %v876 = vunpack.c.h.b16 %v870
        %v877 = vpack.c.b16 %v875, %v873
        %v878 = vpack.c.b16 %v876, %v874
        %v881 = vsel %vm510, %v878, 0
        %883 = vmatprep.subr.bf16.mxu0 %v864
        %884 = vmatpush1.bf16.msra.mxu0 %v863
        %885 = vmatprep.subr.bf16.mxu0 %v861
        %886 = vmatpush1.bf16.msra.mxu0 %v860
        %887 = vmatprep.subr.bf16.mxu0 %v858
        %888 = vmatpush1.bf16.msra.mxu0 %v857
        %889 = vmatprep.subr.bf16.mxu0 %v855
        %890 = vmatpush1.bf16.msra.mxu0 %v854
        %891 = vmatprep.subr.bf16.mxu0 %v852
        %892 = vmatpush1.bf16.msra.mxu0 %v851
        %893 = vmatprep.subr.bf16.mxu0 %v849
        %894 = vmatpush1.bf16.msra.mxu0 %v848
        %895 = vmatprep.subr.bf16.mxu0 %v846
        %896 = vmatpush1.bf16.msra.mxu0 %v845
        %897 = vmatprep.subr.bf16.mxu0 %v843
        %898 = vmatpush1.bf16.msra.mxu0 %v842
        %899 = vmatprep.subr.bf16.mxu0 0
        %900 = vmatpush2.bf16.msra.mxu0 0
        %901 = vmatprep.subr.bf16.mxu0 0
        %902 = vmatpush2.bf16.msra.mxu0 0
        %903 = vmatprep.subr.bf16.mxu0 0
        %904 = vmatpush2.bf16.msra.mxu0 0
        %905 = vmatprep.subr.bf16.mxu0 0
        %906 = vmatpush2.bf16.msra.mxu0 0
        %907 = vmatprep.subr.bf16.mxu0 0
        %908 = vmatpush2.bf16.msra.mxu0 0
        %909 = vmatprep.subr.bf16.mxu0 0
        %910 = vmatpush2.bf16.msra.mxu0 0
        %911 = vmatprep.subr.bf16.mxu0 0
        %912 = vmatpush2.bf16.msra.mxu0 0
        %913 = vmatprep.subr.bf16.mxu0 %v867
        %914 = vmatpush2.bf16.msra.mxu0 %v866
        %915 = vmatprep.mubr.bf16.mxu0 %v881
        %916 = vmatmul.mubr.bf16.gmra.mxu0 %v877
        %v917 = vpop.f32.mrf.mxu0
        %v918 = vadd.f32 0.0, %v917
        %v919 = vpop.f32.mrf.mxu0
        %v920 = vadd.f32 0.0, %v919
        %v921 = vpop.f32.mrf.mxu0
        %v922 = vadd.f32 0.0, %v921
        %v923 = vpop.f32.mrf.mxu0
        %v924 = vadd.f32 0.0, %v923
        %925 = vdwg.mxu0
        %926 = vmatprep.subr.bf16.mxu0 0
        %927 = vmatpush1.bf16.msra.mxu0 %v865
        %928 = vmatprep.subr.bf16.mxu0 0
        %929 = vmatpush1.bf16.msra.mxu0 %v862
        %930 = vmatprep.subr.bf16.mxu0 0
        %931 = vmatpush1.bf16.msra.mxu0 %v859
        %932 = vmatprep.subr.bf16.mxu0 0
        %933 = vmatpush1.bf16.msra.mxu0 %v856
        %934 = vmatprep.subr.bf16.mxu0 0
        %935 = vmatpush1.bf16.msra.mxu0 %v853
        %936 = vmatprep.subr.bf16.mxu0 0
        %937 = vmatpush1.bf16.msra.mxu0 %v850
        %938 = vmatprep.subr.bf16.mxu0 0
        %939 = vmatpush1.bf16.msra.mxu0 %v847
        %940 = vmatprep.subr.bf16.mxu0 0
        %941 = vmatpush1.bf16.msra.mxu0 %v844
        %942 = vmatprep.subr.bf16.mxu0 0
        %943 = vmatpush2.bf16.msra.mxu0 0
        %944 = vmatprep.subr.bf16.mxu0 0
        %945 = vmatpush2.bf16.msra.mxu0 0
        %946 = vmatprep.subr.bf16.mxu0 0
        %947 = vmatpush2.bf16.msra.mxu0 0
        %948 = vmatprep.subr.bf16.mxu0 0
        %949 = vmatpush2.bf16.msra.mxu0 0
        %950 = vmatprep.subr.bf16.mxu0 0
        %951 = vmatpush2.bf16.msra.mxu0 0
        %952 = vmatprep.subr.bf16.mxu0 0
        %953 = vmatpush2.bf16.msra.mxu0 0
        %954 = vmatprep.subr.bf16.mxu0 0
        %955 = vmatpush2.bf16.msra.mxu0 0
        %956 = vmatprep.subr.bf16.mxu0 0
        %957 = vmatpush2.bf16.msra.mxu0 %v868
        %958 = vmatprep.mubr.bf16.mxu0 %v881
        %959 = vmatmul.mubr.bf16.gmra.mxu0 %v877
        %v960 = vpop.f32.mrf.mxu0
        %v961 = vadd.f32 0.0, %v960
        %v962 = vpop.f32.mrf.mxu0
        %v963 = vpop.f32.mrf.mxu0
        %v964 = vadd.f32 0.0, %v963
        %v965 = vpop.f32.mrf.mxu0
        %966 = vdwg.mxu0
        %969 = vrot.lane.b32.xlu0 %v918, 109
        %v970 = vpop.permute.xlu0 %969
        %971 = vrot.lane.b32.xlu0 %v922, 109
        %v972 = vpop.permute.xlu0 %971
        %975 = vrot.lane.b32.xlu0 %v918, 107
        %v976 = vpop.permute.xlu0 %975
        %977 = vrot.lane.b32.xlu0 %v922, 107
        %v978 = vpop.permute.xlu0 %977
        %981 = vrot.lane.b32.xlu0 %v918, 105
        %v982 = vpop.permute.xlu0 %981
        %983 = vrot.lane.b32.xlu0 %v922, 105
        %v984 = vpop.permute.xlu0 %983
        %987 = vrot.lane.b32.xlu0 %v918, 103
        %v988 = vpop.permute.xlu0 %987
        %989 = vrot.lane.b32.xlu0 %v922, 103
        %v990 = vpop.permute.xlu0 %989
        %993 = vrot.lane.b32.xlu0 %v918, 101
        %v994 = vpop.permute.xlu0 %993
        %995 = vrot.lane.b32.xlu0 %v922, 101
        %v996 = vpop.permute.xlu0 %995
        %999 = vrot.lane.b32.xlu0 %v918, 99
        %v1000 = vpop.permute.xlu0 %999
        %1001 = vrot.lane.b32.xlu0 %v922, 99
        %v1002 = vpop.permute.xlu0 %1001
        %1007 = vrot.lane.b32.xlu0 %v918, 97
        %v1008 = vpop.permute.xlu0 %1007
        %1009 = vrot.lane.b32.xlu0 %v920, 97
        %v1010 = vpop.permute.xlu0 %1009
        %1011 = vrot.lane.b32.xlu0 %v922, 97
        %v1012 = vpop.permute.xlu0 %1011
        %1013 = vrot.lane.b32.xlu0 %v924, 97
        %v1014 = vpop.permute.xlu0 %1013
        %vm1015 = vcmask 793600
        %v1016 = vsel %vm1015, %v1008, %v1010
        %v1017 = vsel %vm1015, %v1012, %v1014
        %1020 = vrot.lane.b32.xlu0 %v920, 95
        %v1021 = vpop.permute.xlu0 %1020
        %1022 = vrot.lane.b32.xlu0 %v924, 95
        %v1023 = vpop.permute.xlu0 %1022
        %1026 = vrot.lane.b32.xlu0 %v920, 93
        %v1027 = vpop.permute.xlu0 %1026
        %1028 = vrot.lane.b32.xlu0 %v924, 93
        %v1029 = vpop.permute.xlu0 %1028
        %1032 = vrot.lane.b32.xlu0 %v920, 91
        %v1033 = vpop.permute.xlu0 %1032
        %1034 = vrot.lane.b32.xlu0 %v924, 91
        %v1035 = vpop.permute.xlu0 %1034
        %1038 = vrot.lane.b32.xlu0 %v920, 89
        %v1039 = vpop.permute.xlu0 %1038
        %1040 = vrot.lane.b32.xlu0 %v924, 89
        %v1041 = vpop.permute.xlu0 %1040
        %1044 = vrot.lane.b32.xlu0 %v920, 87
        %v1045 = vpop.permute.xlu0 %1044
        %1046 = vrot.lane.b32.xlu0 %v924, 87
        %v1047 = vpop.permute.xlu0 %1046
        %1050 = vrot.lane.b32.xlu0 %v920, 85
        %v1051 = vpop.permute.xlu0 %1050
        %1052 = vrot.lane.b32.xlu0 %v924, 85
        %v1053 = vpop.permute.xlu0 %1052
        %1058 = vrot.lane.b32.xlu0 %v920, 83
        %v1059 = vpop.permute.xlu0 %1058
        %1060 = vrot.lane.b32.xlu0 %v961, 83
        %v1061 = vpop.permute.xlu0 %1060
        %1062 = vrot.lane.b32.xlu0 %v924, 83
        %v1063 = vpop.permute.xlu0 %1062
        %1064 = vrot.lane.b32.xlu0 %v964, 83
        %v1065 = vpop.permute.xlu0 %1064
        %vm1066 = vcmask 678912
        %v1067 = vsel %vm1066, %v1059, %v1061
        %v1068 = vsel %vm1066, %v1063, %v1065
        %1071 = vrot.lane.b32.xlu0 %v961, 81
        %v1072 = vpop.permute.xlu0 %1071
        %1073 = vrot.lane.b32.xlu0 %v964, 81
        %v1074 = vpop.permute.xlu0 %1073
        %1077 = vrot.lane.b32.xlu0 %v961, 79
        %v1078 = vpop.permute.xlu0 %1077
        %1079 = vrot.lane.b32.xlu0 %v964, 79
        %v1080 = vpop.permute.xlu0 %1079
        %v1083 = vsel %vm510, %v970, %v976
        %v1084 = vsel %vm510, %v972, %v978
        %vm1085 = vcmask 261120
        %v1086 = vsel %vm1085, %v1083, %v982
        %v1087 = vsel %vm1085, %v1084, %v984
        %vm1088 = vcmask 392192
        %v1089 = vsel %vm1088, %v1086, %v988
        %v1090 = vsel %vm1088, %v1087, %v990
        %vm1091 = vcmask 523264
        %v1092 = vsel %vm1091, %v1089, %v994
        %v1093 = vsel %vm1091, %v1090, %v996
        %vm1094 = vcmask 654336
        %v1095 = vsel %vm1094, %v1092, %v1000
        %v1096 = vsel %vm1094, %v1093, %v1002
        %vm1097 = vcmask 785408
        %v1098 = vsel %vm1097, %v1095, %v1016
        %v1099 = vsel %vm1097, %v1096, %v1017
        %vm1100 = vcmask 916480
        %v1101 = vsel %vm1100, %v1098, %v1021
        %v1102 = vsel %vm1100, %v1099, %v1023
        %v1103 = vsel %vm510, %v1027, %v1033
        %v1104 = vsel %vm510, %v1029, %v1035
        %v1105 = vsel %vm1085, %v1103, %v1039
        %v1106 = vsel %vm1085, %v1104, %v1041
        %v1107 = vsel %vm1088, %v1105, %v1045
        %v1108 = vsel %vm1088, %v1106, %v1047
        %v1109 = vsel %vm1091, %v1107, %v1051
        %v1110 = vsel %vm1091, %v1108, %v1053
        %v1111 = vsel %vm1094, %v1109, %v1067
        %v1112 = vsel %vm1094, %v1110, %v1068
        %v1113 = vsel %vm1097, %v1111, %v1072
        %v1114 = vsel %vm1097, %v1112, %v1074
        %v1115 = vsel %vm1100, %v1113, %v1078
        %v1116 = vsel %vm1100, %v1114, %v1080
        %v1117 = vld [vmem:[%s3] sm:$0xff]
        %v1118 = vld [vmem:[%s3 + $0x8] sm:$0xff]
        %1120 = vset.pattern.permute.xlu0 0
        %1121 = vperm.xlu0 %1120, %v1117
        %v1122 = vpop.permute.xlu0 %1121
        %1125 = vset.pattern.permute.xlu0 0
        %1126 = vperm.xlu0 %1125, %v1118
        %v1127 = vpop.permute.xlu0 %1126
        %v1129 = vadd.f32 %v1101, %v1122
        %v1130 = vadd.f32 %v1115, %v1122
        %v1131 = vadd.f32 %v1102, %v1127
        %v1132 = vadd.f32 %v1116, %v1127
        %v1133 = vmax.f32 %v1129, 0.0
        %v1134 = vmax.f32 %v1130, 0.0
        %v1135 = vmax.f32 %v1131, 0.0
        %v1136 = vmax.f32 %v1132, 0.0
        %v1137 = vpack.c.bf16 %v1135, %v1133
        %v1138 = vpack.c.bf16 %v1136, %v1134
        %v1139 = vld [vmem:[%s4] sm:$0xf]
        %v1140 = vld [vmem:[%s4 + $0x4] sm:$0xf]
        %v1141 = vld [vmem:[%s4 + $0x8] sm:$0xf]
        %v1142 = vld [vmem:[%s4 + $0xc] sm:$0xf]
        %v1143 = vld [vmem:[%s5] sm:$0xff]
        %v1144 = vld [vmem:[%s5 + $0x8] sm:$0xff]
        %v1145 = vld [vmem:[%s5 + $0x10] sm:$0xff]
        %v1146 = vld [vmem:[%s5 + $0x18] sm:$0xff]
        %1148 = vset.pattern.permute.xlu0 0
        %1149 = vperm.xlu0 %1148, %v1143
        %v1150 = vpop.permute.xlu0 %1149
        %1153 = vset.pattern.permute.xlu0 0
        %1154 = vperm.xlu0 %1153, %v1144
        %v1155 = vpop.permute.xlu0 %1154
        %1158 = vset.pattern.permute.xlu0 0
        %1159 = vperm.xlu0 %1158, %v1145
        %v1160 = vpop.permute.xlu0 %1159
        %1163 = vset.pattern.permute.xlu0 0
        %1164 = vperm.xlu0 %1163, %v1146
        %v1165 = vpop.permute.xlu0 %1164
        %v1171 = vunpack.c.l.b16 %v1139
        %v1172 = vunpack.c.l.b16 %v1140
        %v1173 = vunpack.c.l.b16 %v1141
        %v1174 = vunpack.c.l.b16 %v1142
        %v1175 = vpack.c.b16 %v1172, %v1171
        %v1176 = vpack.c.b16 %v1174, %v1173
        %v1178 = vsel %vm510, %v1175, 0
        %v1181 = vsel %vm510, %v1176, 0
        %1183 = vmatprep.subr.bf16.mxu0 0
        %1184 = vmatpush1.bf16.msra.mxu0 0
        %1185 = vmatprep.subr.bf16.mxu0 0
        %1186 = vmatpush1.bf16.msra.mxu0 0
        %1187 = vmatprep.subr.bf16.mxu0 0
        %1188 = vmatpush1.bf16.msra.mxu0 0
        %1189 = vmatprep.subr.bf16.mxu0 0
        %1190 = vmatpush1.bf16.msra.mxu0 0
        %1191 = vmatprep.subr.bf16.mxu0 0
        %1192 = vmatpush1.bf16.msra.mxu0 0
        %1193 = vmatprep.subr.bf16.mxu0 0
        %1194 = vmatpush1.bf16.msra.mxu0 0
        %1195 = vmatprep.subr.bf16.mxu0 0
        %1196 = vmatpush1.bf16.msra.mxu0 0
        %1197 = vmatprep.subr.bf16.mxu0 %v1138
        %1198 = vmatpush1.bf16.msra.mxu0 %v1137
        %1199 = vmatprep.subr.bf16.mxu0 0
        %1200 = vmatpush2.bf16.msra.mxu0 0
        %1201 = vmatprep.subr.bf16.mxu0 0
        %1202 = vmatpush2.bf16.msra.mxu0 0
        %1203 = vmatprep.subr.bf16.mxu0 0
        %1204 = vmatpush2.bf16.msra.mxu0 0
        %1205 = vmatprep.subr.bf16.mxu0 0
        %1206 = vmatpush2.bf16.msra.mxu0 0
        %1207 = vmatprep.subr.bf16.mxu0 0
        %1208 = vmatpush2.bf16.msra.mxu0 0
        %1209 = vmatprep.subr.bf16.mxu0 0
        %1210 = vmatpush2.bf16.msra.mxu0 0
        %1211 = vmatprep.subr.bf16.mxu0 0
        %1212 = vmatpush2.bf16.msra.mxu0 0
        %1213 = vmatprep.subr.bf16.mxu0 0
        %1214 = vmatpush2.bf16.msra.mxu0 0
        %1215 = vmatprep.mubr.bf16.mxu0 0
        %1216 = vmatmul.mubr.bf16.gmra.mxu0 %v1178
        %v1217 = vpop.f32.mrf.mxu0
        %v1218 = vadd.f32 %v1150, %v1217
        %v1219 = vpop.f32.mrf.mxu0
        %v1220 = vadd.f32 %v1150, %v1219
        %v1221 = vpop.f32.mrf.mxu0
        %v1222 = vadd.f32 %v1155, %v1221
        %v1223 = vpop.f32.mrf.mxu0
        %v1224 = vadd.f32 %v1155, %v1223
        %1225 = vmatprep.mubr.bf16.mxu0 0
        %1226 = vmatmul.mubr.bf16.gmra.mxu0 %v1181
        %v1227 = vpop.f32.mrf.mxu0
        %v1228 = vadd.f32 %v1160, %v1227
        %v1229 = vpop.f32.mrf.mxu0
        %v1230 = vadd.f32 %v1160, %v1229
        %v1231 = vpop.f32.mrf.mxu0
        %v1232 = vadd.f32 %v1165, %v1231
        %v1233 = vpop.f32.mrf.mxu0
        %v1234 = vadd.f32 %v1165, %v1233
        %1235 = vdwg.mxu0
        %v1236 = vmul.f32 %v1218, %v1218
        %v1237 = vmul.f32 %v1220, %v1220
        %v1238 = vrot.slane %v1236, 4
        %v1239 = vadd.f32 %v1236, %v1238
        %v1240 = vrot.slane %v1239, 2
        %v1241 = vadd.f32 %v1239, %v1240
        %v1242 = vrot.slane %v1241, 1
        %v1243 = vadd.f32 %v1241, %v1242
        %v1244 = vrot.slane %v1237, 4
        %v1245 = vadd.f32 %v1237, %v1244
        %v1246 = vrot.slane %v1245, 2
        %v1247 = vadd.f32 %v1245, %v1246
        %v1248 = vrot.slane %v1247, 1
        %v1249 = vadd.f32 %v1247, %v1248
        %v1250 = vadd.f32 %v1243, 1e-12
        %v1251 = vadd.f32 %v1249, 1e-12
        %v1252 = vrsqrt.pop %v1250
        %v1253 = vrsqrt.pop %v1251
        %v1254 = vmul.f32 %v1218, %v1252
        %v1255 = vmul.f32 %v1220, %v1253
        %v1256 = vmul.f32 %v1222, %v1222
        %v1257 = vmul.f32 %v1224, %v1224
        %v1258 = vrot.slane %v1256, 4
        %v1259 = vadd.f32 %v1256, %v1258
        %v1260 = vrot.slane %v1259, 2
        %v1261 = vadd.f32 %v1259, %v1260
        %v1262 = vrot.slane %v1261, 1
        %v1263 = vadd.f32 %v1261, %v1262
        %v1264 = vrot.slane %v1257, 4
        %v1265 = vadd.f32 %v1257, %v1264
        %v1266 = vrot.slane %v1265, 2
        %v1267 = vadd.f32 %v1265, %v1266
        %v1268 = vrot.slane %v1267, 1
        %v1269 = vadd.f32 %v1267, %v1268
        %v1270 = vadd.f32 %v1263, 1e-12
        %v1271 = vadd.f32 %v1269, 1e-12
        %v1272 = vrsqrt.pop %v1270
        %v1273 = vrsqrt.pop %v1271
        %v1274 = vmul.f32 %v1222, %v1272
        %v1275 = vmul.f32 %v1224, %v1273
        %v1276 = vadd.f32 %v1274, %v1275
        %1277 = vadd.xlane.f32.xlu0 %v1276
        %v1278 = vpop.xlane.xlu0 %1277
        %v1279 = vadd.f32 %v1278, 1e-06
        %v1280 = vmul.f32 %v1254, %v1279
        %v1281 = vmul.f32 %v1255, %v1279
        %v1282 = vrot.slane %v1280, 4
        %v1283 = vadd.f32 %v1280, %v1282
        %v1284 = vrot.slane %v1283, 2
        %v1285 = vadd.f32 %v1283, %v1284
        %v1286 = vrot.slane %v1285, 1
        %v1287 = vadd.f32 %v1285, %v1286
        %v1288 = vrot.slane %v1281, 4
        %v1289 = vadd.f32 %v1281, %v1288
        %v1290 = vrot.slane %v1289, 2
        %v1291 = vadd.f32 %v1289, %v1290
        %v1292 = vrot.slane %v1291, 1
        %v1293 = vadd.f32 %v1291, %v1292
        %v1294 = vadd.f32 %v1287, 256.0
        %v1295 = vadd.f32 %v1293, 256.0
        %v1296 = vrcp.pop %v1294
        %v1297 = vrcp.pop %v1295
        %v1298 = vadd.f32 %v1228, %v1230
        %1299 = vadd.xlane.f32.xlu0 %v1298
        %v1300 = vpop.xlane.xlu0 %1299
        %v1301 = vadd.f32 %v1232, %v1234
        %1302 = vadd.xlane.f32.xlu0 %v1301
        %v1303 = vpop.xlane.xlu0 %1302
        %v1304 = vpack.c.bf16 %v1274, %v1274
        %v1305 = vpack.c.bf16 %v1275, %v1275
        %v1306 = vpack.c.bf16 %v1254, %v1254
        %v1307 = vpack.c.bf16 %v1255, %v1255
        %v1308 = vpack.c.bf16 %v1232, %v1228
        %v1309 = vpack.c.bf16 %v1234, %v1230
        %1310 = vmatprep.subr.bf16.mxu0 0
        %1311 = vmatpush1.bf16.xpose.msra.mxu0 0
        %1312 = vmatprep.subr.bf16.mxu0 0
        %1313 = vmatpush1.bf16.xpose.msra.mxu0 0
        %1314 = vmatprep.subr.bf16.mxu0 0
        %1315 = vmatpush1.bf16.xpose.msra.mxu0 0
        %1316 = vmatprep.subr.bf16.mxu0 0
        %1317 = vmatpush1.bf16.xpose.msra.mxu0 0
        %1318 = vmatprep.subr.bf16.mxu0 0
        %1319 = vmatpush1.bf16.xpose.msra.mxu0 0
        %1320 = vmatprep.subr.bf16.mxu0 0
        %1321 = vmatpush1.bf16.xpose.msra.mxu0 0
        %1322 = vmatprep.subr.bf16.mxu0 0
        %1323 = vmatpush1.bf16.xpose.msra.mxu0 0
        %1324 = vmatprep.subr.bf16.mxu0 %v1309
        %1325 = vmatpush1.bf16.xpose.msra.mxu0 %v1308
        %1326 = vmatprep.subr.bf16.mxu0 0
        %1327 = vmatpush2.bf16.xpose.msra.mxu0 0
        %1328 = vmatprep.subr.bf16.mxu0 0
        %1329 = vmatpush2.bf16.xpose.msra.mxu0 0
        %1330 = vmatprep.subr.bf16.mxu0 0
        %1331 = vmatpush2.bf16.xpose.msra.mxu0 0
        %1332 = vmatprep.subr.bf16.mxu0 0
        %1333 = vmatpush2.bf16.xpose.msra.mxu0 0
        %1334 = vmatprep.subr.bf16.mxu0 0
        %1335 = vmatpush2.bf16.xpose.msra.mxu0 0
        %1336 = vmatprep.subr.bf16.mxu0 0
        %1337 = vmatpush2.bf16.xpose.msra.mxu0 0
        %1338 = vmatprep.subr.bf16.mxu0 0
        %1339 = vmatpush2.bf16.xpose.msra.mxu0 0
        %1340 = vmatprep.subr.bf16.mxu0 0
        %1341 = vmatpush2.bf16.xpose.msra.mxu0 0
        %1342 = vmatprep.mubr.bf16.mxu0 %v1305
        %1343 = vmatmul.mubr.bf16.gmra.mxu0 %v1304
        %v1344 = vpop.f32.mrf.mxu0
        %v1345 = vadd.f32 0.0, %v1344
        %v1346 = vpop.f32.mrf.mxu0
        %v1347 = vpop.f32.mrf.mxu0
        %v1348 = vpop.f32.mrf.mxu0
        %1349 = vdwg.mxu0
        %v1350 = vpack.c.bf16 %v1345, %v1345
        %1351 = vxpose.xlu0.c.b16.start [1/8] %v1350, 128
        %1352 = vxpose.xlu0.c.b16.cont [2/8] 0, 128
        %1353 = vxpose.xlu0.c.b16.cont [3/8] 0, 128
        %1354 = vxpose.xlu0.c.b16.cont [4/8] 0, 128
        %1355 = vxpose.xlu0.c.b16.cont [5/8] 0, 128
        %1356 = vxpose.xlu0.c.b16.cont [6/8] 0, 128
        %1357 = vxpose.xlu0.c.b16.cont [7/8] 0, 128
        %1358 = vxpose.xlu0.c.b16.end [8/8] 0, 128
        %v1359 = vpop.trf.xlu0
        %v1360 = vpop.trf.xlu0
        %v1361 = vpop.trf.xlu0
        %v1362 = vpop.trf.xlu0
        %v1363 = vpop.trf.xlu0
        %v1364 = vpop.trf.xlu0
        %v1365 = vpop.trf.xlu0
        %v1366 = vpop.trf.xlu0
        %vm1367 = vcmask 64512
        %v1369 = vsel %vm1367, %v1359, 0
        %vm1371 = vcmask 1043456
        %v1373 = vsel %vm1371, %v1306, 0
        %v1376 = vsel %vm1371, %v1307, 0
        %1378 = vmatprep.subr.bf16.mxu0 0
        %1379 = vmatpush1.bf16.msra.mxu0 0
        %1380 = vmatprep.subr.bf16.mxu0 0
        %1381 = vmatpush1.bf16.msra.mxu0 0
        %1382 = vmatprep.subr.bf16.mxu0 0
        %1383 = vmatpush1.bf16.msra.mxu0 0
        %1384 = vmatprep.subr.bf16.mxu0 0
        %1385 = vmatpush1.bf16.msra.mxu0 0
        %1386 = vmatprep.subr.bf16.mxu0 0
        %1387 = vmatpush1.bf16.msra.mxu0 0
        %1388 = vmatprep.subr.bf16.mxu0 0
        %1389 = vmatpush1.bf16.msra.mxu0 0
        %1390 = vmatprep.subr.bf16.mxu0 0
        %1391 = vmatpush1.bf16.msra.mxu0 0
        %1392 = vmatprep.subr.bf16.mxu0 %v1376
        %1393 = vmatpush1.bf16.msra.mxu0 %v1373
        %1394 = vmatprep.subr.bf16.mxu0 0
        %1395 = vmatpush2.bf16.msra.mxu0 0
        %1396 = vmatprep.subr.bf16.mxu0 0
        %1397 = vmatpush2.bf16.msra.mxu0 0
        %1398 = vmatprep.subr.bf16.mxu0 0
        %1399 = vmatpush2.bf16.msra.mxu0 0
        %1400 = vmatprep.subr.bf16.mxu0 0
        %1401 = vmatpush2.bf16.msra.mxu0 0
        %1402 = vmatprep.subr.bf16.mxu0 0
        %1403 = vmatpush2.bf16.msra.mxu0 0
        %1404 = vmatprep.subr.bf16.mxu0 0
        %1405 = vmatpush2.bf16.msra.mxu0 0
        %1406 = vmatprep.subr.bf16.mxu0 0
        %1407 = vmatpush2.bf16.msra.mxu0 0
        %1408 = vmatprep.subr.bf16.mxu0 0
        %1409 = vmatpush2.bf16.msra.mxu0 0
        %1410 = vmatprep.mubr.bf16.mxu0 0
        %1411 = vmatmul.mubr.bf16.gmra.mxu0 %v1369
        %v1412 = vpop.f32.mrf.mxu0
        %v1413 = vadd.f32 0.0, %v1412
        %v1414 = vpop.f32.mrf.mxu0
        %v1415 = vadd.f32 0.0, %v1414
        %v1416 = vpop.f32.mrf.mxu0
        %v1417 = vadd.f32 0.0, %v1416
        %v1418 = vpop.f32.mrf.mxu0
        %v1419 = vadd.f32 0.0, %v1418
        %1420 = vdwg.mxu0
        %v1421 = vadd.f32 %v1300, %v1413
        %v1422 = vadd.f32 %v1300, %v1415
        %v1423 = vadd.f32 %v1303, %v1417
        %v1424 = vadd.f32 %v1303, %v1419
        %s1425 = sld [smem:[#allocation3]]
        %v1426 = vmul.f32 %v1421, %v1296
        %v1427 = vmul.f32 %v1422, %v1297
        %v1428 = vmul.f32 %v1423, %v1296
        %v1429 = vmul.f32 %v1424, %v1297
        %v1430 = vstv %s1425
        %v1431 = vmul.f32 %v1430, %v1426
        %v1432 = vmul.f32 %v1430, %v1427
        %v1433 = vmul.f32 %v1430, %v1428
        %v1434 = vmul.f32 %v1430, %v1429
        %v1435 = vadd.f32 %v1133, %v1431
        %v1436 = vadd.f32 %v1134, %v1432
        %v1437 = vadd.f32 %v1135, %v1433
        %v1438 = vadd.f32 %v1136, %v1434
        %1439 = vmatprep.subr.mxu0 0.0
        %1440 = vmatpush1.xpose.msra.mxu0 0.0
        %1441 = vmatprep.subr.mxu0 0.0
        %1442 = vmatpush1.xpose.msra.mxu0 0.0
        %1443 = vmatprep.subr.mxu0 0.0
        %1444 = vmatpush1.xpose.msra.mxu0 0.0
        %1445 = vmatprep.subr.mxu0 0.0
        %1446 = vmatpush1.xpose.msra.mxu0 0.0
        %1447 = vmatprep.subr.mxu0 0.0
        %1448 = vmatpush1.xpose.msra.mxu0 0.0
        %1449 = vmatprep.subr.mxu0 0.0
        %1450 = vmatpush1.xpose.msra.mxu0 0.0
        %1451 = vmatprep.subr.mxu0 0.0
        %1452 = vmatpush1.xpose.msra.mxu0 0.0
        %1453 = vmatprep.subr.mxu0 0.0
        %1454 = vmatpush1.xpose.msra.mxu0 0.0
        %1455 = vmatprep.subr.mxu0 0.0
        %1456 = vmatpush1.xpose.msra.mxu0 0.0
        %1457 = vmatprep.subr.mxu0 0.0
        %1458 = vmatpush1.xpose.msra.mxu0 0.0
        %1459 = vmatprep.subr.mxu0 0.0
        %1460 = vmatpush1.xpose.msra.mxu0 0.0
        %1461 = vmatprep.subr.mxu0 0.0
        %1462 = vmatpush1.xpose.msra.mxu0 0.0
        %1463 = vmatprep.subr.mxu0 0.0
        %1464 = vmatpush1.xpose.msra.mxu0 0.0
        %1465 = vmatprep.subr.mxu0 0.0
        %1466 = vmatpush1.xpose.msra.mxu0 0.0
        %1467 = vmatprep.subr.mxu0 %v1136
        %1468 = vmatpush1.xpose.msra.mxu0 %v1135
        %1469 = vmatprep.subr.mxu0 %v1134
        %1470 = vmatpush1.xpose.msra.mxu0 %v1133
        %1471 = vmatprep.subr.mxu0 0.0
        %1472 = vmatpush2.xpose.msra.mxu0 0.0
        %1473 = vmatprep.subr.mxu0 0.0
        %1474 = vmatpush2.xpose.msra.mxu0 0.0
        %1475 = vmatprep.subr.mxu0 0.0
        %1476 = vmatpush2.xpose.msra.mxu0 0.0
        %1477 = vmatprep.subr.mxu0 0.0
        %1478 = vmatpush2.xpose.msra.mxu0 0.0
        %1479 = vmatprep.subr.mxu0 0.0
        %1480 = vmatpush2.xpose.msra.mxu0 0.0
        %1481 = vmatprep.subr.mxu0 0.0
        %1482 = vmatpush2.xpose.msra.mxu0 0.0
        %1483 = vmatprep.subr.mxu0 0.0
        %1484 = vmatpush2.xpose.msra.mxu0 0.0
        %1485 = vmatprep.subr.mxu0 0.0
        %1486 = vmatpush2.xpose.msra.mxu0 0.0
        %1487 = vmatprep.subr.mxu0 0.0
        %1488 = vmatpush2.xpose.msra.mxu0 0.0
        %1489 = vmatprep.subr.mxu0 0.0
        %1490 = vmatpush2.xpose.msra.mxu0 0.0
        %1491 = vmatprep.subr.mxu0 0.0
        %1492 = vmatpush2.xpose.msra.mxu0 0.0
        %1493 = vmatprep.subr.mxu0 0.0
        %1494 = vmatpush2.xpose.msra.mxu0 0.0
        %1495 = vmatprep.subr.mxu0 0.0
        %1496 = vmatpush2.xpose.msra.mxu0 0.0
        %1497 = vmatprep.subr.mxu0 0.0
        %1498 = vmatpush2.xpose.msra.mxu0 0.0
        %1499 = vmatprep.subr.mxu0 0.0
        %1500 = vmatpush2.xpose.msra.mxu0 0.0
        %1501 = vmatprep.subr.mxu0 0.0
        %1502 = vmatpush2.xpose.msra.mxu0 0.0
        %1503 = vmatprep.mubr.f32.mxu0 %v1134
        %1504 = vmatmul.mubr.f32.gmra.mxu0 %v1133
        %v1505 = vpop.f32.mrf.mxu0
        %v1506 = vadd.f32 0.0, %v1505
        %v1507 = vpop.f32.mrf.mxu0
        %1508 = vmatprep.mubr.f32.mxu0 %v1136
        %1509 = vmatmul.mubr.f32.gmra.mxu0 %v1135
        %v1510 = vpop.f32.mrf.mxu0
        %v1511 = vadd.f32 0.0, %v1510
        %v1512 = vpop.f32.mrf.mxu0
        %1513 = vdwg.mxu0
        %v1514 = vsel %vm510, %v1506, -inf
        %1515 = vmax.xlane.f32.xlu0 %v1514
        %v1516 = vpop.xlane.xlu0 %1515
        %v1517 = vsel %vm510, %v1511, -inf
        %1518 = vmax.xlane.f32.xlu0 %v1517
        %v1519 = vpop.xlane.xlu0 %1518
        %v1520 = vsub.f32 %v1516, %v1506
        %v1521 = vsub.f32 %v1519, %v1511
        %v1522 = vsel %vm510, %v1520, -inf
        %1523 = vmax.xlane.f32.xlu0 %v1522
        %v1524 = vpop.xlane.xlu0 %1523
        %v1525 = vsel %vm510, %v1521, -inf
        %1526 = vmax.xlane.f32.xlu0 %v1525
        %v1527 = vpop.xlane.xlu0 %1526
        %v1528 = vsub.f32 %v1520, %v1524
        %v1529 = vsub.f32 %v1521, %v1527
        %v1530 = vmul.f32 %v1528, 1.442695
        %v1531 = vpow.pop %v1530
        %v1532 = vmul.f32 %v1529, 1.442695
        %v1533 = vpow.pop %v1532
        %v1534 = vsel %vm510, %v1531, 0.0
        %1535 = vadd.xlane.f32.xlu0 %v1534
        %v1536 = vpop.xlane.xlu0 %1535
        %v1537 = vsel %vm510, %v1533, 0.0
        %1538 = vadd.xlane.f32.xlu0 %v1537
        %v1539 = vpop.xlane.xlu0 %1538
        %v1540 = vrcp.pop %v1536
        %v1541 = vmul.f32 %v1531, %v1540
        %v1542 = vrcp.pop %v1539
        %v1543 = vmul.f32 %v1533, %v1542
        %s1544 = sld [smem:[#allocation3 + $0x1]]
        %v1545 = vpack.c.bf16 %v1543, %v1541
        %v1547 = vsel %vm510, %v1545, 0
        %1549 = vmatprep.subr.bf16.mxu0 0
        %1550 = vmatpush1.bf16.msra.mxu0 0
        %1551 = vmatprep.subr.bf16.mxu0 0
        %1552 = vmatpush1.bf16.msra.mxu0 0
        %1553 = vmatprep.subr.bf16.mxu0 0
        %1554 = vmatpush1.bf16.msra.mxu0 0
        %1555 = vmatprep.subr.bf16.mxu0 0
        %1556 = vmatpush1.bf16.msra.mxu0 0
        %1557 = vmatprep.subr.bf16.mxu0 0
        %1558 = vmatpush1.bf16.msra.mxu0 0
        %1559 = vmatprep.subr.bf16.mxu0 0
        %1560 = vmatpush1.bf16.msra.mxu0 0
        %1561 = vmatprep.subr.bf16.mxu0 0
        %1562 = vmatpush1.bf16.msra.mxu0 0
        %1563 = vmatprep.subr.bf16.mxu0 %v1138
        %1564 = vmatpush1.bf16.msra.mxu0 %v1137
        %1565 = vmatprep.subr.bf16.mxu0 0
        %1566 = vmatpush2.bf16.msra.mxu0 0
        %1567 = vmatprep.subr.bf16.mxu0 0
        %1568 = vmatpush2.bf16.msra.mxu0 0
        %1569 = vmatprep.subr.bf16.mxu0 0
        %1570 = vmatpush2.bf16.msra.mxu0 0
        %1571 = vmatprep.subr.bf16.mxu0 0
        %1572 = vmatpush2.bf16.msra.mxu0 0
        %1573 = vmatprep.subr.bf16.mxu0 0
        %1574 = vmatpush2.bf16.msra.mxu0 0
        %1575 = vmatprep.subr.bf16.mxu0 0
        %1576 = vmatpush2.bf16.msra.mxu0 0
        %1577 = vmatprep.subr.bf16.mxu0 0
        %1578 = vmatpush2.bf16.msra.mxu0 0
        %1579 = vmatprep.subr.bf16.mxu0 0
        %1580 = vmatpush2.bf16.msra.mxu0 0
        %1581 = vmatprep.mubr.bf16.mxu0 0
        %1582 = vmatmul.mubr.bf16.gmra.mxu0 %v1547
        %v1583 = vpop.f32.mrf.mxu0
        %v1584 = vadd.f32 0.0, %v1583
        %v1585 = vpop.f32.mrf.mxu0
        %v1586 = vadd.f32 0.0, %v1585
        %v1587 = vpop.f32.mrf.mxu0
        %v1588 = vadd.f32 0.0, %v1587
        %v1589 = vpop.f32.mrf.mxu0
        %v1590 = vadd.f32 0.0, %v1589
        %1591 = vdwg.mxu0
        %v1592 = vstv %s1544
        %v1593 = vmul.f32 %v1592, %v1584
        %v1594 = vmul.f32 %v1592, %v1586
        %v1595 = vmul.f32 %v1592, %v1588
        %v1596 = vmul.f32 %v1592, %v1590
        %v1597 = vadd.f32 %v1593, %v1133
        %v1598 = vadd.f32 %v1594, %v1134
        %v1599 = vadd.f32 %v1595, %v1135
        %v1600 = vadd.f32 %v1596, %v1136
        %v1601 = vld [vmem:[%s6] sm:$0xf]
        %v1602 = vld [vmem:[%s6 + $0x4] sm:$0xf]
        %v1603 = vpack.c.bf16 %v1437, %v1435
        %v1604 = vpack.c.bf16 %v1438, %v1436
        %v1605 = vld [vmem:[%s7] sm:$0xff]
        %v1606 = vld [vmem:[%s7 + $0x8] sm:$0xff]
        %1608 = vset.pattern.permute.xlu0 0
        %1609 = vperm.xlu0 %1608, %v1605
        %v1610 = vpop.permute.xlu0 %1609
        %1613 = vset.pattern.permute.xlu0 0
        %1614 = vperm.xlu0 %1613, %v1606
        %v1615 = vpop.permute.xlu0 %1614
        %v1619 = vunpack.c.l.b16 %v1601
        %v1620 = vunpack.c.l.b16 %v1602
        %v1621 = vpack.c.b16 %v1620, %v1619
        %v1623 = vsel %vm510, %v1621, 0
        %1625 = vmatprep.subr.bf16.mxu0 0
        %1626 = vmatpush1.bf16.msra.mxu0 0
        %1627 = vmatprep.subr.bf16.mxu0 0
        %1628 = vmatpush1.bf16.msra.mxu0 0
        %1629 = vmatprep.subr.bf16.mxu0 0
        %1630 = vmatpush1.bf16.msra.mxu0 0
        %1631 = vmatprep.subr.bf16.mxu0 0
        %1632 = vmatpush1.bf16.msra.mxu0 0
        %1633 = vmatprep.subr.bf16.mxu0 0
        %1634 = vmatpush1.bf16.msra.mxu0 0
        %1635 = vmatprep.subr.bf16.mxu0 0
        %1636 = vmatpush1.bf16.msra.mxu0 0
        %1637 = vmatprep.subr.bf16.mxu0 0
        %1638 = vmatpush1.bf16.msra.mxu0 0
        %1639 = vmatprep.subr.bf16.mxu0 %v1604
        %1640 = vmatpush1.bf16.msra.mxu0 %v1603
        %1641 = vmatprep.subr.bf16.mxu0 0
        %1642 = vmatpush2.bf16.msra.mxu0 0
        %1643 = vmatprep.subr.bf16.mxu0 0
        %1644 = vmatpush2.bf16.msra.mxu0 0
        %1645 = vmatprep.subr.bf16.mxu0 0
        %1646 = vmatpush2.bf16.msra.mxu0 0
        %1647 = vmatprep.subr.bf16.mxu0 0
        %1648 = vmatpush2.bf16.msra.mxu0 0
        %1649 = vmatprep.subr.bf16.mxu0 0
        %1650 = vmatpush2.bf16.msra.mxu0 0
        %1651 = vmatprep.subr.bf16.mxu0 0
        %1652 = vmatpush2.bf16.msra.mxu0 0
        %1653 = vmatprep.subr.bf16.mxu0 0
        %1654 = vmatpush2.bf16.msra.mxu0 0
        %1655 = vmatprep.subr.bf16.mxu0 0
        %1656 = vmatpush2.bf16.msra.mxu0 0
        %1657 = vmatprep.mubr.bf16.mxu0 0
        %1658 = vmatmul.mubr.bf16.gmra.mxu0 %v1623
        %v1659 = vpop.f32.mrf.mxu0
        %v1660 = vadd.f32 %v1610, %v1659
        %v1661 = vpop.f32.mrf.mxu0
        %v1662 = vadd.f32 %v1610, %v1661
        %v1663 = vpop.f32.mrf.mxu0
        %v1664 = vadd.f32 %v1615, %v1663
        %v1665 = vpop.f32.mrf.mxu0
        %v1666 = vadd.f32 %v1615, %v1665
        %1667 = vdwg.mxu0
        %v1668 = vmax.f32 %v1660, 0.0
        %v1669 = vmax.f32 %v1662, 0.0
        %v1670 = vmax.f32 %v1664, 0.0
        %v1671 = vmax.f32 %v1666, 0.0
        %v1672 = vld [vmem:[%s8] sm:$0xf]
        %v1673 = vld [vmem:[%s8 + $0x4] sm:$0xf]
        %v1674 = vpack.c.bf16 %v1599, %v1597
        %v1675 = vpack.c.bf16 %v1600, %v1598
        %v1676 = vld [vmem:[%s9] sm:$0xff]
        %v1677 = vld [vmem:[%s9 + $0x8] sm:$0xff]
        %1679 = vset.pattern.permute.xlu0 0
        %1680 = vperm.xlu0 %1679, %v1676
        %v1681 = vpop.permute.xlu0 %1680
        %1684 = vset.pattern.permute.xlu0 0
        %1685 = vperm.xlu0 %1684, %v1677
        %v1686 = vpop.permute.xlu0 %1685
        %v1690 = vunpack.c.l.b16 %v1672
        %v1691 = vunpack.c.l.b16 %v1673
        %v1692 = vpack.c.b16 %v1691, %v1690
        %v1694 = vsel %vm510, %v1692, 0
        %1696 = vmatprep.subr.bf16.mxu0 0
        %1697 = vmatpush1.bf16.msra.mxu0 0
        %1698 = vmatprep.subr.bf16.mxu0 0
        %1699 = vmatpush1.bf16.msra.mxu0 0
        %1700 = vmatprep.subr.bf16.mxu0 0
        %1701 = vmatpush1.bf16.msra.mxu0 0
        %1702 = vmatprep.subr.bf16.mxu0 0
        %1703 = vmatpush1.bf16.msra.mxu0 0
        %1704 = vmatprep.subr.bf16.mxu0 0
        %1705 = vmatpush1.bf16.msra.mxu0 0
        %1706 = vmatprep.subr.bf16.mxu0 0
        %1707 = vmatpush1.bf16.msra.mxu0 0
        %1708 = vmatprep.subr.bf16.mxu0 0
        %1709 = vmatpush1.bf16.msra.mxu0 0
        %1710 = vmatprep.subr.bf16.mxu0 %v1675
        %1711 = vmatpush1.bf16.msra.mxu0 %v1674
        %1712 = vmatprep.subr.bf16.mxu0 0
        %1713 = vmatpush2.bf16.msra.mxu0 0
        %1714 = vmatprep.subr.bf16.mxu0 0
        %1715 = vmatpush2.bf16.msra.mxu0 0
        %1716 = vmatprep.subr.bf16.mxu0 0
        %1717 = vmatpush2.bf16.msra.mxu0 0
        %1718 = vmatprep.subr.bf16.mxu0 0
        %1719 = vmatpush2.bf16.msra.mxu0 0
        %1720 = vmatprep.subr.bf16.mxu0 0
        %1721 = vmatpush2.bf16.msra.mxu0 0
        %1722 = vmatprep.subr.bf16.mxu0 0
        %1723 = vmatpush2.bf16.msra.mxu0 0
        %1724 = vmatprep.subr.bf16.mxu0 0
        %1725 = vmatpush2.bf16.msra.mxu0 0
        %1726 = vmatprep.subr.bf16.mxu0 0
        %1727 = vmatpush2.bf16.msra.mxu0 0
        %1728 = vmatprep.mubr.bf16.mxu0 0
        %1729 = vmatmul.mubr.bf16.gmra.mxu0 %v1694
        %v1730 = vpop.f32.mrf.mxu0
        %v1731 = vadd.f32 %v1681, %v1730
        %v1732 = vpop.f32.mrf.mxu0
        %v1733 = vadd.f32 %v1681, %v1732
        %v1734 = vpop.f32.mrf.mxu0
        %v1735 = vadd.f32 %v1686, %v1734
        %v1736 = vpop.f32.mrf.mxu0
        %v1737 = vadd.f32 %v1686, %v1736
        %1738 = vdwg.mxu0
        %v1739 = vmax.f32 %v1731, 0.0
        %v1740 = vmax.f32 %v1733, 0.0
        %v1741 = vmax.f32 %v1735, 0.0
        %v1742 = vmax.f32 %v1737, 0.0
        %v1743 = vld [vmem:[%s10] sm:$0xf]
        %v1744 = vld [vmem:[%s10 + $0x4] sm:$0xf]
        %v1745 = vadd.f32 %v1668, %v1739
        %v1746 = vadd.f32 %v1669, %v1740
        %v1747 = vadd.f32 %v1670, %v1741
        %v1748 = vadd.f32 %v1671, %v1742
        %v1749 = vpack.c.bf16 %v1747, %v1745
        %v1750 = vpack.c.bf16 %v1748, %v1746
        %v1751 = vld [vmem:[%s11] sm:$0xff]
        %v1752 = vld [vmem:[%s11 + $0x8] sm:$0xff]
        %1754 = vset.pattern.permute.xlu0 0
        %1755 = vperm.xlu0 %1754, %v1751
        %v1756 = vpop.permute.xlu0 %1755
        %1759 = vset.pattern.permute.xlu0 0
        %1760 = vperm.xlu0 %1759, %v1752
        %v1761 = vpop.permute.xlu0 %1760
        %v1765 = vunpack.c.l.b16 %v1743
        %v1766 = vunpack.c.l.b16 %v1744
        %v1767 = vpack.c.b16 %v1766, %v1765
        %v1769 = vsel %vm510, %v1767, 0
        %1771 = vmatprep.subr.bf16.mxu0 0
        %1772 = vmatpush1.bf16.msra.mxu0 0
        %1773 = vmatprep.subr.bf16.mxu0 0
        %1774 = vmatpush1.bf16.msra.mxu0 0
        %1775 = vmatprep.subr.bf16.mxu0 0
        %1776 = vmatpush1.bf16.msra.mxu0 0
        %1777 = vmatprep.subr.bf16.mxu0 0
        %1778 = vmatpush1.bf16.msra.mxu0 0
        %1779 = vmatprep.subr.bf16.mxu0 0
        %1780 = vmatpush1.bf16.msra.mxu0 0
        %1781 = vmatprep.subr.bf16.mxu0 0
        %1782 = vmatpush1.bf16.msra.mxu0 0
        %1783 = vmatprep.subr.bf16.mxu0 0
        %1784 = vmatpush1.bf16.msra.mxu0 0
        %1785 = vmatprep.subr.bf16.mxu0 %v1750
        %1786 = vmatpush1.bf16.msra.mxu0 %v1749
        %1787 = vmatprep.subr.bf16.mxu0 0
        %1788 = vmatpush2.bf16.msra.mxu0 0
        %1789 = vmatprep.subr.bf16.mxu0 0
        %1790 = vmatpush2.bf16.msra.mxu0 0
        %1791 = vmatprep.subr.bf16.mxu0 0
        %1792 = vmatpush2.bf16.msra.mxu0 0
        %1793 = vmatprep.subr.bf16.mxu0 0
        %1794 = vmatpush2.bf16.msra.mxu0 0
        %1795 = vmatprep.subr.bf16.mxu0 0
        %1796 = vmatpush2.bf16.msra.mxu0 0
        %1797 = vmatprep.subr.bf16.mxu0 0
        %1798 = vmatpush2.bf16.msra.mxu0 0
        %1799 = vmatprep.subr.bf16.mxu0 0
        %1800 = vmatpush2.bf16.msra.mxu0 0
        %1801 = vmatprep.subr.bf16.mxu0 0
        %1802 = vmatpush2.bf16.msra.mxu0 0
        %1803 = vmatprep.mubr.bf16.mxu0 0
        %1804 = vmatmul.mubr.bf16.gmra.mxu0 %v1769
        %v1805 = vpop.f32.mrf.mxu0
        %v1806 = vadd.f32 %v1756, %v1805
        %v1807 = vpop.f32.mrf.mxu0
        %v1808 = vadd.f32 %v1756, %v1807
        %v1809 = vpop.f32.mrf.mxu0
        %v1810 = vadd.f32 %v1761, %v1809
        %v1811 = vpop.f32.mrf.mxu0
        %v1812 = vadd.f32 %v1761, %v1811
        %1813 = vdwg.mxu0
        %v1814 = vmax.f32 %v1806, 0.0
        %v1815 = vmax.f32 %v1808, 0.0
        %v1816 = vmax.f32 %v1810, 0.0
        %v1817 = vmax.f32 %v1812, 0.0
        %1818 = vst [vmem:[%s427] sm:$0xff] %v1814
        %1819 = vst [vmem:[%s427 + $0x8] sm:$0xff] %v1815
        %1820 = vst [vmem:[%s427 + $0x10] sm:$0xff] %v1816
        %1821 = vst [vmem:[%s427 + $0x18] sm:$0xff] %v1817
        %p1822 = scmp.lt.s32.totalorder %s24, 1
        %s1823 = scalar_select %p1822, %s24, 1
        %s1824 = smul.addr %s1823, 4
        %s1825 = smul.addr %s1824, 8
        %s1826 = scalar_lea.vmem %s12, %s1825
        // Predicated region
        $region73: #{pam_cam_layer.1} parent=67 // pred_check
          %p1827 = pneg %p299
        $region74: #{pam_cam_layer.1} parent=67 // pred_check_branch
          %1829 = sbr.rel (%p1827) target = $region76
        $region75: #{pam_cam_layer.1} parent=67 // pred_region
          _
        $region76: #{pam_cam_layer.1} parent=67 // pred_fallthru
          _
      $region68: #{pam_cam_layer.1} parent=5 // pred_fallthru
        _
      %p1830 = scmp.le.s32.totalorder 2, %s19
      // Predicated region
      $region77: #{pam_cam_layer.1} parent=5 // pred_check
        %p1831 = pneg %p1830
      $region78: #{pam_cam_layer.1} parent=5 // pred_check_branch
        %1833 = sbr.rel (%p1831) target = $region80
      $region79: #{pam_cam_layer.1} parent=5 // pred_region
        %s1834 = ssub.s32 %s19, 2
        // Predicated region
        $region81: #{pam_cam_layer.1} parent=79 // pred_check
          %p1835 = pneg %p305
        $region82: #{pam_cam_layer.1} parent=79 // pred_check_branch
          %1837 = sbr.rel (%p1835) target = $region84
        $region83: #{pam_cam_layer.1} parent=79 // pred_region
          %p1838 = scmp.lt.s32.totalorder %s25, 1
          %s1839 = scalar_select %p1838, %s25, 1
          %s1840 = smul.addr %s1839, 4
          %s1841 = smul.addr %s1840, 8
          %s1842 = scalar_lea.vmem %s12, %s1841
        $region84: #{pam_cam_layer.1} parent=79 // pred_fallthru
          _
      $region80: #{pam_cam_layer.1} parent=5 // pred_fallthru
        _
    $region6: #{pam_cam_layer.1} parent=1 // loop_footer
      %s23 = sadd.s32 1, %s19
    $region7: #{pam_cam_layer.1} parent=1 // loop_footer_branch
      %18 = sbr.rel target = $region3
    $region8: #{pam_cam_layer.1} parent=1 // loop_exit
      _
    %1843 = vsyncpa [#allocation4], 1
    %s1844 = scalar_lea.sflag [#allocation4], 1
    %1845 = vsyncpa %s1844, 1

</llo_original>
